<compile_context>
chip_gen: v7x
topology: tpu7x:2x2x1
jax: 0.10.0
libtpu: 0.0.40
codegen_flags: <defaults>
</compile_context>

<pallas_src>
import functools

import jax
import jax.numpy as jnp
from jax.experimental import pallas as pl
from jax.experimental.pallas import tpu as pltpu

_LANE = 128


def _round_up(x: int, m: int) -> int:
    return ((x + m - 1) // m) * m


def _cdiv(a: int, b: int) -> int:
    return -(-a // b)


def ae_kernel(x_ref,
              w1_ref, b1_ref,
              w2_ref, b2_ref,
              w3_ref, b3_ref,
              w4_ref, b4_ref,
              w5_ref, b5_ref,
              out_ref,
              *, matmul_dtype, groups, feat):
    """One batch tile of the full AE forward. Weights/biases are VMEM-resident."""

    def dense(a, w_ref, b_ref):
        # MXU matmul (operands optionally bf16), f32 accumulation, f32 bias add.
        return (jnp.dot(a.astype(matmul_dtype), w_ref[...],
                        preferred_element_type=jnp.float32)
                + b_ref[...])

    if groups > 1:
        # Lane-dense slab: x_ref is (rows, 128) where lanes [feat*c, feat*(c+1))
        # of slab-row q hold logical batch row (groups*q + c).  Un-pack it into
        # a row-PERMUTED (tile_b, feat) matrix (rows are independent through the
        # whole network; the matching lane-slice stores below apply the inverse
        # permutation).  Only lane-slice loads + axis-0 concat — no reshapes.
        x = jnp.concatenate(
            [x_ref[:, c * feat:(c + 1) * feat] for c in range(groups)], axis=0)
    else:
        x = x_ref[...]

    # --- encoder ---
    h1 = jnp.maximum(dense(x, w1_ref, b1_ref), 0.0)      # ReLU (Dropout = id)
    z = dense(h1, w2_ref, b2_ref)

    # --- F.normalize(p=2, dim=1): z / max(||z||, 1e-12) ---
    # EUP rsqrt; clamping sum-of-squares at 1e-24 == clamping the norm at 1e-12.
    sumsq = jnp.sum(z * z, axis=1, keepdims=True)
    z = z * jax.lax.rsqrt(jnp.maximum(sumsq, 1e-24))

    # --- decoder ---
    d1 = jnp.maximum(dense(z, w3_ref, b3_ref), 0.0)

    # --- final_layer ---
    f1 = jnp.maximum(dense(d1, w4_ref, b4_ref), 0.0)
    out = dense(f1, w5_ref, b5_ref)                      # (tile_b, feat), f32

    if groups > 1:
        rows = x_ref.shape[0]
        for c in range(groups):
            out_ref[:, c * feat:(c + 1) * feat] = (
                out[c * rows:(c + 1) * rows, :].astype(out_ref.dtype))
    else:
        out_ref[...] = out.astype(out_ref.dtype)


def _choose_tile(batch: int, tile_max: int, gran: int):
    """Pick (tile rows, grid steps): tile <= tile_max, tile % gran == 0, minimal
    zero-padding, and >=2 grid steps when the batch allows it so v7x's two
    TensorCores both get a tile."""
    tile_max = max(gran, (tile_max // gran) * gran)
    steps = _cdiv(batch, tile_max)
    if steps == 1 and batch > 2 * gran:
        steps = 2
    tile = _round_up(_cdiv(batch, steps), gran)
    steps = _cdiv(batch, tile)
    return tile, steps


def _ae_pallas(x, params, *, tile_b, use_bf16, lane_dense):
    B, input_dim = x.shape
    (w1, b1), (w2, b2), (w3, b3), (w4, b4), (w5, b5) = params
    hidden = w1.shape[1]
    latent = w2.shape[1]
    assert w5.shape[1] == input_dim, "AE reconstructs its input dimension"

    matmul_dtype = jnp.bfloat16 if use_bf16 else jnp.float32
    if use_bf16:
        # Stream bf16 activations: halves input HBM bytes and drops the
        # in-kernel f32->bf16 cast for the first matmul (v6e/v7x).
        x = x.astype(jnp.bfloat16)

    # Lane-dense slab layout applies whenever input_dim divides 128.
    groups = _LANE // input_dim if (lane_dense and _LANE % input_dim == 0) else 1
    sub = 16 if use_bf16 else 8               # sublane granularity per dtype
    gran = sub * groups                       # batch-row granularity per tile
    tile, steps = _choose_tile(B, tile_b, gran)
    Bp = tile * steps

    if Bp != B:
        # Minimal zero-pad (at most one row-granule per grid step); padded rows
        # stay finite through the rsqrt clamp and are sliced off below.
        x = jnp.pad(x, ((0, Bp - B), (0, 0)))

    weights = [w.astype(matmul_dtype) for w in (w1, w2, w3, w4, w5)]
    biases = [b.astype(jnp.float32) for b in (b1, b2, b3, b4, b5)]
    flat = []
    for w, b in zip(weights, biases):
        flat += [w, b]

    if groups > 1:
        # Layout-preserving reshape: [Bp, feat] -> [Bp*feat/128, 128] slab.
        x = x.reshape(Bp // groups, _LANE)
        io_block = (tile // groups, _LANE)
        out_struct = jax.ShapeDtypeStruct((Bp // groups, _LANE), jnp.float32)
    else:
        io_block = (tile, input_dim)          # full last dim -> legal BlockSpec
        out_struct = jax.ShapeDtypeStruct((Bp, input_dim), jnp.float32)

    # x/out tiled over batch; weights/biases use constant index_maps so they are
    # DMA'd once and stay resident in VMEM across grid steps (~50 KB; the
    # default double-buffering of these constant blocks costs nothing that matters).
    in_specs = [pl.BlockSpec(io_block, lambda i: (i, 0))]
    in_specs += [pl.BlockSpec(a.shape, lambda i: (0, 0)) for a in flat]
    out_specs = pl.BlockSpec(io_block, lambda i: (i, 0))

    # Scheduler hint: 5 matmuls + 1 rsqrt per row, minimal HBM traffic.
    flops = 2 * Bp * (input_dim * hidden + hidden * latent + latent * hidden
                      + hidden * hidden + hidden * input_dim)
    weight_bytes = sum(a.size * a.dtype.itemsize for a in flat)
    bytes_accessed = (Bp * input_dim * x.dtype.itemsize      # input (bf16 or f32)
                      + Bp * input_dim * 4                   # f32 output
                      + weight_bytes)
    cost = pl.CostEstimate(flops=flops, transcendentals=Bp,
                           bytes_accessed=bytes_accessed)

    # VMEM footprint: double-buffered x/out tiles + (double-buffered) resident
    # weights + activation slabs; 2x headroom, capped at v7x's 64 MiB VMEM.
    step_bytes = (2 * tile * input_dim * x.dtype.itemsize    # x tile x2
                  + 2 * tile * input_dim * 4                 # out tile x2
                  + 2 * weight_bytes
                  + tile * (3 * hidden + latent + input_dim) * 4)
    vmem_limit = int(min(64 * 1024 * 1024, max(16 * 1024 * 1024, 2 * step_bytes)))

    kernel = functools.partial(ae_kernel, matmul_dtype=matmul_dtype,
                               groups=groups, feat=input_dim)

    out = pl.pallas_call(
        kernel,
        out_shape=out_struct,
        grid_spec=pltpu.PrefetchScalarGridSpec(
            num_scalar_prefetch=0,
            grid=(steps,),
            in_specs=in_specs,
            out_specs=out_specs,
        ),
        compiler_params=pltpu.CompilerParams(
            dimension_semantics=("parallel",),   # shard batch tiles across TCs (v7x)
            vmem_limit_bytes=vmem_limit,
        ),
        cost_estimate=cost,
    )(x, *flat)

    if groups > 1:
        out = out.reshape(Bp, input_dim)         # contiguous, layout-preserving
    return out[:B] if Bp != B else out


_LANE_DENSE_OK = True


def ae_forward(x, params, *, tile_b=1024, use_bf16=False):
    """AE forward (inference). x: [B, input_dim]; params: 5 (W[in,out], b[1,out]) pairs.

    tile_b: max batch rows per grid step.  Same default for v5e/v6e/v7x —
      Mosaic splits the M dimension into MXU passes internally, so large
      (HBM/DMA-friendly) tiles are right on all three generations.
    use_bf16: stream bf16 activations and feed bf16 MXU operands (v6e/v7x);
      accumulation, bias, ReLU and the L2-normalize stay in f32.
    """
    global _LANE_DENSE_OK
    if _LANE_DENSE_OK:
        try:
            return _ae_pallas(x, params, tile_b=tile_b, use_bf16=use_bf16,
                              lane_dense=True)
        except Exception:
            # Safety net: if this Mosaic version cannot lower the lane-dense
            # slab path (lane-slice loads/stores + axis-0 concat), fall back to
            # plain [tile, input_dim] blocks.  Numerics are identical.
            _LANE_DENSE_OK = False
    return _ae_pallas(x, params, tile_b=tile_b, use_bf16=use_bf16,
                      lane_dense=False)


def init_linear(key, fan_in, fan_out):
    """PyTorch-style uniform(-1/sqrt(fan_in), 1/sqrt(fan_in)) init, [in, out] layout."""
    kw, kb = jax.random.split(key)
    bound = 1.0 / jnp.sqrt(fan_in)
    w = jax.random.uniform(kw, (fan_in, fan_out), jnp.float32, -bound, bound)
    b = jax.random.uniform(kb, (1, fan_out), jnp.float32, -bound, bound)
    return w, b


def ae_reference(x, params):
    """Plain-JAX reference (mirrors the PyTorch forward in eval mode)."""
    (w1, b1), (w2, b2), (w3, b3), (w4, b4), (w5, b5) = params
    h1 = jnp.maximum(x @ w1 + b1, 0.0)
    z = h1 @ w2 + b2
    z = z / jnp.maximum(jnp.linalg.norm(z, axis=1, keepdims=True), 1e-12)
    d1 = jnp.maximum(z @ w3 + b3, 0.0)
    f1 = jnp.maximum(d1 @ w4 + b4, 0.0)
    return f1 @ w5 + b5


if __name__ == "__main__":
    # AE(input_dim=32, latent_dim=16, hidden_dims=[64]) — small test shapes.
    input_dim, hidden, latent_dim = 32, 64, 16

    key = jax.random.PRNGKey(0)
    kx1, kx2, k1, k2, k3, k4, k5 = jax.random.split(key, 7)

    params = [
        init_linear(k1, input_dim, hidden),     # encoder Linear 1
        init_linear(k2, hidden, latent_dim),    # encoder Linear 2 (to latent)
        init_linear(k3, latent_dim, hidden),    # decoder Linear 1
        init_linear(k4, hidden, hidden),        # final_layer Linear 1
        init_linear(k5, hidden, input_dim),     # final_layer Linear 2
    ]

    # MXU f32 path + EUP rsqrt vs. the XLA reference.
    TOL = 2e-3

    # 1) Tiny batch -> single grid step, lane-dense [*,128] slab I/O.
    x_small = jax.random.normal(kx1, (8, input_dim), jnp.float32)
    out_small = jax.block_until_ready(ae_forward(x_small, params))
    ref_small = ae_reference(x_small, params)
    assert out_small.shape == (8, input_dim)
    assert jnp.allclose(out_small, ref_small, atol=TOL, rtol=TOL)

    # 2) Batch that does not divide the tile -> minimal zero-pad, 2-step grid
    #    (both v7x TensorCores get a tile).
    x_big = jax.random.normal(kx2, (300, input_dim), jnp.float32)
    out_big = jax.block_until_ready(ae_forward(x_big, params))
    ref_big = ae_reference(x_big, params)
    assert out_big.shape == (300, input_dim)
    assert jnp.allclose(out_big, ref_big, atol=TOL, rtol=TOL)

    # 3) bf16 activation streaming + bf16 MXU operands (v6e/v7x path).
    out_bf16 = jax.block_until_ready(ae_forward(x_big, params, use_bf16=True))
    assert out_bf16.shape == (300, input_dim)
    assert jnp.all(jnp.isfinite(out_bf16))
    assert jnp.allclose(out_bf16, ref_big, atol=1.5e-1, rtol=1.5e-1)

    # 4) input_dim that does not divide 128 -> plain [tile, input_dim] blocks.
    input_dim2 = 48
    k6, k7, k8, k9, k10, kx3 = jax.random.split(jax.random.PRNGKey(1), 6)
    params2 = [
        init_linear(k6, input_dim2, hidden),
        init_linear(k7, hidden, latent_dim),
        init_linear(k8, latent_dim, hidden),
        init_linear(k9, hidden, hidden),
        init_linear(k10, hidden, input_dim2),
    ]
    x3 = jax.random.normal(kx3, (40, input_dim2), jnp.float32)
    out3 = jax.block_until_ready(ae_forward(x3, params2))
    assert out3.shape == (40, input_dim2)
    assert jnp.allclose(out3, ae_reference(x3, params2), atol=TOL, rtol=TOL)

    print("KERNEL_OK")
</pallas_src>

<mosaic_0001>
module attributes {stable_mosaic.version = 11 : i64} {
  func.func @ae_kernel(%arg0: i32, %arg1: memref<8x128xf32, #tpu.memory_space<vmem>>, %arg2: memref<32x64xf32, #tpu.memory_space<vmem>>, %arg3: memref<1x64xf32, #tpu.memory_space<vmem>>, %arg4: memref<64x16xf32, #tpu.memory_space<vmem>>, %arg5: memref<1x16xf32, #tpu.memory_space<vmem>>, %arg6: memref<16x64xf32, #tpu.memory_space<vmem>>, %arg7: memref<1x64xf32, #tpu.memory_space<vmem>>, %arg8: memref<64x64xf32, #tpu.memory_space<vmem>>, %arg9: memref<1x64xf32, #tpu.memory_space<vmem>>, %arg10: memref<64x32xf32, #tpu.memory_space<vmem>>, %arg11: memref<1x32xf32, #tpu.memory_space<vmem>>, %arg12: memref<8x128xf32, #tpu.memory_space<vmem>>) attributes {dimension_semantics = [#tpu.dimension_semantics<parallel>], iteration_bounds = array<i64: 1>, scalar_prefetch = 0 : i64, scratch_operands = 0 : i64, tpu.core_type = #tpu.core_type<tc>, window_params = [{transform_indices = @transform_0, window_bounds = array<i64: 8, 128>}, {pipeline_mode = #tpu.pipeline_mode<synchronous>, transform_indices = @transform_1, window_bounds = array<i64: 32, 64>}, {pipeline_mode = #tpu.pipeline_mode<synchronous>, transform_indices = @transform_2, window_bounds = array<i64: 1, 64>}, {pipeline_mode = #tpu.pipeline_mode<synchronous>, transform_indices = @transform_3, window_bounds = array<i64: 64, 16>}, {pipeline_mode = #tpu.pipeline_mode<synchronous>, transform_indices = @transform_4, window_bounds = array<i64: 1, 16>}, {pipeline_mode = #tpu.pipeline_mode<synchronous>, transform_indices = @transform_5, window_bounds = array<i64: 16, 64>}, {pipeline_mode = #tpu.pipeline_mode<synchronous>, transform_indices = @transform_6, window_bounds = array<i64: 1, 64>}, {pipeline_mode = #tpu.pipeline_mode<synchronous>, transform_indices = @transform_7, window_bounds = array<i64: 64, 64>}, {pipeline_mode = #tpu.pipeline_mode<synchronous>, transform_indices = @transform_8, window_bounds = array<i64: 1, 64>}, {pipeline_mode = #tpu.pipeline_mode<synchronous>, transform_indices = @transform_9, window_bounds = array<i64: 64, 32>}, {pipeline_mode = #tpu.pipeline_mode<synchronous>, transform_indices = @transform_10, window_bounds = array<i64: 1, 32>}, {transform_indices = @transform_11, window_bounds = array<i64: 8, 128>}]} {
    %c0 = arith.constant 0 : index
    %c0_0 = arith.constant 0 : index
    %0 = vector.load %arg1[%c0, %c0_0] : memref<8x128xf32, #tpu.memory_space<vmem>>, vector<8x32xf32>
    %c0_1 = arith.constant 0 : index
    %c32 = arith.constant 32 : index
    %1 = vector.load %arg1[%c0_1, %c32] : memref<8x128xf32, #tpu.memory_space<vmem>>, vector<8x32xf32>
    %c0_2 = arith.constant 0 : index
    %c64 = arith.constant 64 : index
    %2 = vector.load %arg1[%c0_2, %c64] : memref<8x128xf32, #tpu.memory_space<vmem>>, vector<8x32xf32>
    %c0_3 = arith.constant 0 : index
    %c96 = arith.constant 96 : index
    %3 = vector.load %arg1[%c0_3, %c96] : memref<8x128xf32, #tpu.memory_space<vmem>>, vector<8x32xf32>
    %4 = tpu.concatenate %0, %1, %2, %3 in 0 : vector<8x32xf32>, vector<8x32xf32>, vector<8x32xf32>, vector<8x32xf32> -> vector<32x32xf32>
    %c0_4 = arith.constant 0 : index
    %c0_5 = arith.constant 0 : index
    %5 = vector.load %arg2[%c0_4, %c0_5] : memref<32x64xf32, #tpu.memory_space<vmem>>, vector<32x64xf32>
    %cst = arith.constant dense<0.000000e+00> : vector<32x64xf32>
    %6 = tpu.matmul %4, %5, %cst {dimension_numbers = #tpu.dot_dimension_numbers<[1], [0], [0], [1], [0, 0, 1, 1], [], []>} : vector<32x32xf32>, vector<32x64xf32>, vector<32x64xf32> -> vector<32x64xf32>
    %c0_6 = arith.constant 0 : index
    %c0_7 = arith.constant 0 : index
    %7 = vector.load %arg3[%c0_6, %c0_7] : memref<1x64xf32, #tpu.memory_space<vmem>>, vector<1x64xf32>
    %8 = vector.broadcast %7 : vector<1x64xf32> to vector<32x64xf32>
    %9 = arith.addf %6, %8 : vector<32x64xf32>
    %cst_8 = arith.constant 0.000000e+00 : f32
    %10 = vector.broadcast %cst_8 : f32 to vector<32x64xf32>
    %11 = arith.maximumf %9, %10 : vector<32x64xf32>
    %c0_9 = arith.constant 0 : index
    %c0_10 = arith.constant 0 : index
    %12 = vector.load %arg4[%c0_9, %c0_10] : memref<64x16xf32, #tpu.memory_space<vmem>>, vector<64x16xf32>
    %cst_11 = arith.constant dense<0.000000e+00> : vector<32x16xf32>
    %13 = tpu.matmul %11, %12, %cst_11 {dimension_numbers = #tpu.dot_dimension_numbers<[1], [0], [0], [1], [0, 0, 1, 1], [], []>} : vector<32x64xf32>, vector<64x16xf32>, vector<32x16xf32> -> vector<32x16xf32>
    %c0_12 = arith.constant 0 : index
    %c0_13 = arith.constant 0 : index
    %14 = vector.load %arg5[%c0_12, %c0_13] : memref<1x16xf32, #tpu.memory_space<vmem>>, vector<1x16xf32>
    %15 = vector.broadcast %14 : vector<1x16xf32> to vector<32x16xf32>
    %16 = arith.addf %13, %15 : vector<32x16xf32>
    %17 = arith.mulf %16, %16 : vector<32x16xf32>
    %cst_14 = arith.constant dense<0.000000e+00> : vector<32xf32>
    %18 = vector.multi_reduction <add>, %17, %cst_14 [1] : vector<32x16xf32> to vector<32xf32>
    %19 = vector.shape_cast %18 : vector<32xf32> to vector<32x1xf32>
    %cst_15 = arith.constant 1.000000e-24 : f32
    %20 = vector.broadcast %cst_15 : f32 to vector<32x1xf32>
    %21 = arith.maximumf %19, %20 : vector<32x1xf32>
    %22 = math.rsqrt %21 : vector<32x1xf32>
    %23 = vector.broadcast %22 : vector<32x1xf32> to vector<32x16xf32>
    %24 = arith.mulf %16, %23 : vector<32x16xf32>
    %c0_16 = arith.constant 0 : index
    %c0_17 = arith.constant 0 : index
    %25 = vector.load %arg6[%c0_16, %c0_17] : memref<16x64xf32, #tpu.memory_space<vmem>>, vector<16x64xf32>
    %cst_18 = arith.constant dense<0.000000e+00> : vector<32x64xf32>
    %26 = tpu.matmul %24, %25, %cst_18 {dimension_numbers = #tpu.dot_dimension_numbers<[1], [0], [0], [1], [0, 0, 1, 1], [], []>} : vector<32x16xf32>, vector<16x64xf32>, vector<32x64xf32> -> vector<32x64xf32>
    %c0_19 = arith.constant 0 : index
    %c0_20 = arith.constant 0 : index
    %27 = vector.load %arg7[%c0_19, %c0_20] : memref<1x64xf32, #tpu.memory_space<vmem>>, vector<1x64xf32>
    %28 = vector.broadcast %27 : vector<1x64xf32> to vector<32x64xf32>
    %29 = arith.addf %26, %28 : vector<32x64xf32>
    %cst_21 = arith.constant 0.000000e+00 : f32
    %30 = vector.broadcast %cst_21 : f32 to vector<32x64xf32>
    %31 = arith.maximumf %29, %30 : vector<32x64xf32>
    %c0_22 = arith.constant 0 : index
    %c0_23 = arith.constant 0 : index
    %32 = vector.load %arg8[%c0_22, %c0_23] : memref<64x64xf32, #tpu.memory_space<vmem>>, vector<64x64xf32>
    %cst_24 = arith.constant dense<0.000000e+00> : vector<32x64xf32>
    %33 = tpu.matmul %31, %32, %cst_24 {dimension_numbers = #tpu.dot_dimension_numbers<[1], [0], [0], [1], [0, 0, 1, 1], [], []>} : vector<32x64xf32>, vector<64x64xf32>, vector<32x64xf32> -> vector<32x64xf32>
    %c0_25 = arith.constant 0 : index
    %c0_26 = arith.constant 0 : index
    %34 = vector.load %arg9[%c0_25, %c0_26] : memref<1x64xf32, #tpu.memory_space<vmem>>, vector<1x64xf32>
    %35 = vector.broadcast %34 : vector<1x64xf32> to vector<32x64xf32>
    %36 = arith.addf %33, %35 : vector<32x64xf32>
    %cst_27 = arith.constant 0.000000e+00 : f32
    %37 = vector.broadcast %cst_27 : f32 to vector<32x64xf32>
    %38 = arith.maximumf %36, %37 : vector<32x64xf32>
    %c0_28 = arith.constant 0 : index
    %c0_29 = arith.constant 0 : index
    %39 = vector.load %arg10[%c0_28, %c0_29] : memref<64x32xf32, #tpu.memory_space<vmem>>, vector<64x32xf32>
    %cst_30 = arith.constant dense<0.000000e+00> : vector<32x32xf32>
    %40 = tpu.matmul %38, %39, %cst_30 {dimension_numbers = #tpu.dot_dimension_numbers<[1], [0], [0], [1], [0, 0, 1, 1], [], []>} : vector<32x64xf32>, vector<64x32xf32>, vector<32x32xf32> -> vector<32x32xf32>
    %c0_31 = arith.constant 0 : index
    %c0_32 = arith.constant 0 : index
    %41 = vector.load %arg11[%c0_31, %c0_32] : memref<1x32xf32, #tpu.memory_space<vmem>>, vector<1x32xf32>
    %42 = vector.broadcast %41 : vector<1x32xf32> to vector<32x32xf32>
    %43 = arith.addf %40, %42 : vector<32x32xf32>
    %44 = vector.extract_strided_slice %43 {offsets = [0, 0], sizes = [8, 32], strides = [1, 1]} : vector<32x32xf32> to vector<8x32xf32>
    %c0_33 = arith.constant 0 : index
    %c0_34 = arith.constant 0 : index
    %45 = vector.load %arg12[%c0_33, %c0_34] : memref<8x128xf32, #tpu.memory_space<vmem>>, vector<8x32xf32>
    tpu.vector_store %arg12[%c0_33, %c0_34], %44 {strides = array<i32>} : memref<8x128xf32, #tpu.memory_space<vmem>>, vector<8x32xf32>,
    %46 = vector.extract_strided_slice %43 {offsets = [8, 0], sizes = [8, 32], strides = [1, 1]} : vector<32x32xf32> to vector<8x32xf32>
    %c0_35 = arith.constant 0 : index
    %c32_36 = arith.constant 32 : index
    %47 = vector.load %arg12[%c0_35, %c32_36] : memref<8x128xf32, #tpu.memory_space<vmem>>, vector<8x32xf32>
    tpu.vector_store %arg12[%c0_35, %c32_36], %46 {strides = array<i32>} : memref<8x128xf32, #tpu.memory_space<vmem>>, vector<8x32xf32>,
    %48 = vector.extract_strided_slice %43 {offsets = [16, 0], sizes = [8, 32], strides = [1, 1]} : vector<32x32xf32> to vector<8x32xf32>
    %c0_37 = arith.constant 0 : index
    %c64_38 = arith.constant 64 : index
    %49 = vector.load %arg12[%c0_37, %c64_38] : memref<8x128xf32, #tpu.memory_space<vmem>>, vector<8x32xf32>
    tpu.vector_store %arg12[%c0_37, %c64_38], %48 {strides = array<i32>} : memref<8x128xf32, #tpu.memory_space<vmem>>, vector<8x32xf32>,
    %50 = vector.extract_strided_slice %43 {offsets = [24, 0], sizes = [8, 32], strides = [1, 1]} : vector<32x32xf32> to vector<8x32xf32>
    %c0_39 = arith.constant 0 : index
    %c96_40 = arith.constant 96 : index
    %51 = vector.load %arg12[%c0_39, %c96_40] : memref<8x128xf32, #tpu.memory_space<vmem>>, vector<8x32xf32>
    tpu.vector_store %arg12[%c0_39, %c96_40], %50 {strides = array<i32>} : memref<8x128xf32, #tpu.memory_space<vmem>>, vector<8x32xf32>,
    return
  }
  func.func @transform_0(%arg0: i32) -> (i32, i32) {
    %c0_i32 = arith.constant 0 : i32
    %c0_i32_0 = arith.constant 0 : i32
    return %arg0, %c0_i32 : i32, i32
  }
  func.func @transform_1(%arg0: i32) -> (i32, i32) {
    %c0_i32 = arith.constant 0 : i32
    %c0_i32_0 = arith.constant 0 : i32
    %c0_i32_1 = arith.constant 0 : i32
    return %c0_i32, %c0_i32_0 : i32, i32
  }
  func.func @transform_2(%arg0: i32) -> (i32, i32) {
    %c0_i32 = arith.constant 0 : i32
    %c0_i32_0 = arith.constant 0 : i32
    %c0_i32_1 = arith.constant 0 : i32
    return %c0_i32, %c0_i32_0 : i32, i32
  }
  func.func @transform_3(%arg0: i32) -> (i32, i32) {
    %c0_i32 = arith.constant 0 : i32
    %c0_i32_0 = arith.constant 0 : i32
    %c0_i32_1 = arith.constant 0 : i32
    return %c0_i32, %c0_i32_0 : i32, i32
  }
  func.func @transform_4(%arg0: i32) -> (i32, i32) {
    %c0_i32 = arith.constant 0 : i32
    %c0_i32_0 = arith.constant 0 : i32
    %c0_i32_1 = arith.constant 0 : i32
    return %c0_i32, %c0_i32_0 : i32, i32
  }
  func.func @transform_5(%arg0: i32) -> (i32, i32) {
    %c0_i32 = arith.constant 0 : i32
    %c0_i32_0 = arith.constant 0 : i32
    %c0_i32_1 = arith.constant 0 : i32
    return %c0_i32, %c0_i32_0 : i32, i32
  }
  func.func @transform_6(%arg0: i32) -> (i32, i32) {
    %c0_i32 = arith.constant 0 : i32
    %c0_i32_0 = arith.constant 0 : i32
    %c0_i32_1 = arith.constant 0 : i32
    return %c0_i32, %c0_i32_0 : i32, i32
  }
  func.func @transform_7(%arg0: i32) -> (i32, i32) {
    %c0_i32 = arith.constant 0 : i32
    %c0_i32_0 = arith.constant 0 : i32
    %c0_i32_1 = arith.constant 0 : i32
    return %c0_i32, %c0_i32_0 : i32, i32
  }
  func.func @transform_8(%arg0: i32) -> (i32, i32) {
    %c0_i32 = arith.constant 0 : i32
    %c0_i32_0 = arith.constant 0 : i32
    %c0_i32_1 = arith.constant 0 : i32
    return %c0_i32, %c0_i32_0 : i32, i32
  }
  func.func @transform_9(%arg0: i32) -> (i32, i32) {
    %c0_i32 = arith.constant 0 : i32
    %c0_i32_0 = arith.constant 0 : i32
    %c0_i32_1 = arith.constant 0 : i32
    return %c0_i32, %c0_i32_0 : i32, i32
  }
  func.func @transform_10(%arg0: i32) -> (i32, i32) {
    %c0_i32 = arith.constant 0 : i32
    %c0_i32_0 = arith.constant 0 : i32
    %c0_i32_1 = arith.constant 0 : i32
    return %c0_i32, %c0_i32_0 : i32, i32
  }
  func.func @transform_11(%arg0: i32) -> (i32, i32) {
    %c0_i32 = arith.constant 0 : i32
    %c0_i32_0 = arith.constant 0 : i32
    return %arg0, %c0_i32 : i32, i32
  }
}

module attributes {stable_mosaic.version = 11 : i64} {
  func.func @ae_kernel(%arg0: i32, %arg1: memref<8x32xf32, #tpu.memory_space<vmem>>, %arg2: memref<32x64xf32, #tpu.memory_space<vmem>>, %arg3: memref<1x64xf32, #tpu.memory_space<vmem>>, %arg4: memref<64x16xf32, #tpu.memory_space<vmem>>, %arg5: memref<1x16xf32, #tpu.memory_space<vmem>>, %arg6: memref<16x64xf32, #tpu.memory_space<vmem>>, %arg7: memref<1x64xf32, #tpu.memory_space<vmem>>, %arg8: memref<64x64xf32, #tpu.memory_space<vmem>>, %arg9: memref<1x64xf32, #tpu.memory_space<vmem>>, %arg10: memref<64x32xf32, #tpu.memory_space<vmem>>, %arg11: memref<1x32xf32, #tpu.memory_space<vmem>>, %arg12: memref<8x32xf32, #tpu.memory_space<vmem>>) attributes {dimension_semantics = [#tpu.dimension_semantics<parallel>], iteration_bounds = array<i64: 1>, scalar_prefetch = 0 : i64, scratch_operands = 0 : i64, tpu.core_type = #tpu.core_type<tc>, window_params = [{transform_indices = @transform_0, window_bounds = array<i64: 8, 32>}, {pipeline_mode = #tpu.pipeline_mode<synchronous>, transform_indices = @transform_1, window_bounds = array<i64: 32, 64>}, {pipeline_mode = #tpu.pipeline_mode<synchronous>, transform_indices = @transform_2, window_bounds = array<i64: 1, 64>}, {pipeline_mode = #tpu.pipeline_mode<synchronous>, transform_indices = @transform_3, window_bounds = array<i64: 64, 16>}, {pipeline_mode = #tpu.pipeline_mode<synchronous>, transform_indices = @transform_4, window_bounds = array<i64: 1, 16>}, {pipeline_mode = #tpu.pipeline_mode<synchronous>, transform_indices = @transform_5, window_bounds = array<i64: 16, 64>}, {pipeline_mode = #tpu.pipeline_mode<synchronous>, transform_indices = @transform_6, window_bounds = array<i64: 1, 64>}, {pipeline_mode = #tpu.pipeline_mode<synchronous>, transform_indices = @transform_7, window_bounds = array<i64: 64, 64>}, {pipeline_mode = #tpu.pipeline_mode<synchronous>, transform_indices = @transform_8, window_bounds = array<i64: 1, 64>}, {pipeline_mode = #tpu.pipeline_mode<synchronous>, transform_indices = @transform_9, window_bounds = array<i64: 64, 32>}, {pipeline_mode = #tpu.pipeline_mode<synchronous>, transform_indices = @transform_10, window_bounds = array<i64: 1, 32>}, {transform_indices = @transform_11, window_bounds = array<i64: 8, 32>}]} {
    %c0 = arith.constant 0 : index
    %c0_0 = arith.constant 0 : index
    %0 = vector.load %arg1[%c0, %c0_0] : memref<8x32xf32, #tpu.memory_space<vmem>>, vector<8x32xf32>
    %c0_1 = arith.constant 0 : index
    %c0_2 = arith.constant 0 : index
    %1 = vector.load %arg2[%c0_1, %c0_2] : memref<32x64xf32, #tpu.memory_space<vmem>>, vector<32x64xf32>
    %cst = arith.constant dense<0.000000e+00> : vector<8x64xf32>
    %2 = tpu.matmul %0, %1, %cst {dimension_numbers = #tpu.dot_dimension_numbers<[1], [0], [0], [1], [0, 0, 1, 1], [], []>} : vector<8x32xf32>, vector<32x64xf32>, vector<8x64xf32> -> vector<8x64xf32>
    %c0_3 = arith.constant 0 : index
    %c0_4 = arith.constant 0 : index
    %3 = vector.load %arg3[%c0_3, %c0_4] : memref<1x64xf32, #tpu.memory_space<vmem>>, vector<1x64xf32>
    %4 = vector.broadcast %3 : vector<1x64xf32> to vector<8x64xf32>
    %5 = arith.addf %2, %4 : vector<8x64xf32>
    %cst_5 = arith.constant 0.000000e+00 : f32
    %6 = vector.broadcast %cst_5 : f32 to vector<8x64xf32>
    %7 = arith.maximumf %5, %6 : vector<8x64xf32>
    %c0_6 = arith.constant 0 : index
    %c0_7 = arith.constant 0 : index
    %8 = vector.load %arg4[%c0_6, %c0_7] : memref<64x16xf32, #tpu.memory_space<vmem>>, vector<64x16xf32>
    %cst_8 = arith.constant dense<0.000000e+00> : vector<8x16xf32>
    %9 = tpu.matmul %7, %8, %cst_8 {dimension_numbers = #tpu.dot_dimension_numbers<[1], [0], [0], [1], [0, 0, 1, 1], [], []>} : vector<8x64xf32>, vector<64x16xf32>, vector<8x16xf32> -> vector<8x16xf32>
    %c0_9 = arith.constant 0 : index
    %c0_10 = arith.constant 0 : index
    %10 = vector.load %arg5[%c0_9, %c0_10] : memref<1x16xf32, #tpu.memory_space<vmem>>, vector<1x16xf32>
    %11 = vector.broadcast %10 : vector<1x16xf32> to vector<8x16xf32>
    %12 = arith.addf %9, %11 : vector<8x16xf32>
    %13 = arith.mulf %12, %12 : vector<8x16xf32>
    %cst_11 = arith.constant dense<0.000000e+00> : vector<8xf32>
    %14 = vector.multi_reduction <add>, %13, %cst_11 [1] : vector<8x16xf32> to vector<8xf32>
    %15 = vector.shape_cast %14 : vector<8xf32> to vector<8x1xf32>
    %cst_12 = arith.constant 1.000000e-24 : f32
    %16 = vector.broadcast %cst_12 : f32 to vector<8x1xf32>
    %17 = arith.maximumf %15, %16 : vector<8x1xf32>
    %18 = math.rsqrt %17 : vector<8x1xf32>
    %19 = vector.broadcast %18 : vector<8x1xf32> to vector<8x16xf32>
    %20 = arith.mulf %12, %19 : vector<8x16xf32>
    %c0_13 = arith.constant 0 : index
    %c0_14 = arith.constant 0 : index
    %21 = vector.load %arg6[%c0_13, %c0_14] : memref<16x64xf32, #tpu.memory_space<vmem>>, vector<16x64xf32>
    %cst_15 = arith.constant dense<0.000000e+00> : vector<8x64xf32>
    %22 = tpu.matmul %20, %21, %cst_15 {dimension_numbers = #tpu.dot_dimension_numbers<[1], [0], [0], [1], [0, 0, 1, 1], [], []>} : vector<8x16xf32>, vector<16x64xf32>, vector<8x64xf32> -> vector<8x64xf32>
    %c0_16 = arith.constant 0 : index
    %c0_17 = arith.constant 0 : index
    %23 = vector.load %arg7[%c0_16, %c0_17] : memref<1x64xf32, #tpu.memory_space<vmem>>, vector<1x64xf32>
    %24 = vector.broadcast %23 : vector<1x64xf32> to vector<8x64xf32>
    %25 = arith.addf %22, %24 : vector<8x64xf32>
    %cst_18 = arith.constant 0.000000e+00 : f32
    %26 = vector.broadcast %cst_18 : f32 to vector<8x64xf32>
    %27 = arith.maximumf %25, %26 : vector<8x64xf32>
    %c0_19 = arith.constant 0 : index
    %c0_20 = arith.constant 0 : index
    %28 = vector.load %arg8[%c0_19, %c0_20] : memref<64x64xf32, #tpu.memory_space<vmem>>, vector<64x64xf32>
    %cst_21 = arith.constant dense<0.000000e+00> : vector<8x64xf32>
    %29 = tpu.matmul %27, %28, %cst_21 {dimension_numbers = #tpu.dot_dimension_numbers<[1], [0], [0], [1], [0, 0, 1, 1], [], []>} : vector<8x64xf32>, vector<64x64xf32>, vector<8x64xf32> -> vector<8x64xf32>
    %c0_22 = arith.constant 0 : index
    %c0_23 = arith.constant 0 : index
    %30 = vector.load %arg9[%c0_22, %c0_23] : memref<1x64xf32, #tpu.memory_space<vmem>>, vector<1x64xf32>
    %31 = vector.broadcast %30 : vector<1x64xf32> to vector<8x64xf32>
    %32 = arith.addf %29, %31 : vector<8x64xf32>
    %cst_24 = arith.constant 0.000000e+00 : f32
    %33 = vector.broadcast %cst_24 : f32 to vector<8x64xf32>
    %34 = arith.maximumf %32, %33 : vector<8x64xf32>
    %c0_25 = arith.constant 0 : index
    %c0_26 = arith.constant 0 : index
    %35 = vector.load %arg10[%c0_25, %c0_26] : memref<64x32xf32, #tpu.memory_space<vmem>>, vector<64x32xf32>
    %cst_27 = arith.constant dense<0.000000e+00> : vector<8x32xf32>
    %36 = tpu.matmul %34, %35, %cst_27 {dimension_numbers = #tpu.dot_dimension_numbers<[1], [0], [0], [1], [0, 0, 1, 1], [], []>} : vector<8x64xf32>, vector<64x32xf32>, vector<8x32xf32> -> vector<8x32xf32>
    %c0_28 = arith.constant 0 : index
    %c0_29 = arith.constant 0 : index
    %37 = vector.load %arg11[%c0_28, %c0_29] : memref<1x32xf32, #tpu.memory_space<vmem>>, vector<1x32xf32>
    %38 = vector.broadcast %37 : vector<1x32xf32> to vector<8x32xf32>
    %39 = arith.addf %36, %38 : vector<8x32xf32>
    %c0_30 = arith.constant 0 : index
    %c0_31 = arith.constant 0 : index
    %40 = vector.load %arg12[%c0_30, %c0_31] : memref<8x32xf32, #tpu.memory_space<vmem>>, vector<8x32xf32>
    tpu.vector_store %arg12[%c0_30, %c0_31], %39 {strides = array<i32>} : memref<8x32xf32, #tpu.memory_space<vmem>>, vector<8x32xf32>,
    return
  }
  func.func @transform_0(%arg0: i32) -> (i32, i32) {
    %c0_i32 = arith.constant 0 : i32
    %c0_i32_0 = arith.constant 0 : i32
    return %arg0, %c0_i32 : i32, i32
  }
  func.func @transform_1(%arg0: i32) -> (i32, i32) {
    %c0_i32 = arith.constant 0 : i32
    %c0_i32_0 = arith.constant 0 : i32
    %c0_i32_1 = arith.constant 0 : i32
    return %c0_i32, %c0_i32_0 : i32, i32
  }
  func.func @transform_2(%arg0: i32) -> (i32, i32) {
    %c0_i32 = arith.constant 0 : i32
    %c0_i32_0 = arith.constant 0 : i32
    %c0_i32_1 = arith.constant 0 : i32
    return %c0_i32, %c0_i32_0 : i32, i32
  }
  func.func @transform_3(%arg0: i32) -> (i32, i32) {
    %c0_i32 = arith.constant 0 : i32
    %c0_i32_0 = arith.constant 0 : i32
    %c0_i32_1 = arith.constant 0 : i32
    return %c0_i32, %c0_i32_0 : i32, i32
  }
  func.func @transform_4(%arg0: i32) -> (i32, i32) {
    %c0_i32 = arith.constant 0 : i32
    %c0_i32_0 = arith.constant 0 : i32
    %c0_i32_1 = arith.constant 0 : i32
    return %c0_i32, %c0_i32_0 : i32, i32
  }
  func.func @transform_5(%arg0: i32) -> (i32, i32) {
    %c0_i32 = arith.constant 0 : i32
    %c0_i32_0 = arith.constant 0 : i32
    %c0_i32_1 = arith.constant 0 : i32
    return %c0_i32, %c0_i32_0 : i32, i32
  }
  func.func @transform_6(%arg0: i32) -> (i32, i32) {
    %c0_i32 = arith.constant 0 : i32
    %c0_i32_0 = arith.constant 0 : i32
    %c0_i32_1 = arith.constant 0 : i32
    return %c0_i32, %c0_i32_0 : i32, i32
  }
  func.func @transform_7(%arg0: i32) -> (i32, i32) {
    %c0_i32 = arith.constant 0 : i32
    %c0_i32_0 = arith.constant 0 : i32
    %c0_i32_1 = arith.constant 0 : i32
    return %c0_i32, %c0_i32_0 : i32, i32
  }
  func.func @transform_8(%arg0: i32) -> (i32, i32) {
    %c0_i32 = arith.constant 0 : i32
    %c0_i32_0 = arith.constant 0 : i32
    %c0_i32_1 = arith.constant 0 : i32
    return %c0_i32, %c0_i32_0 : i32, i32
  }
  func.func @transform_9(%arg0: i32) -> (i32, i32) {
    %c0_i32 = arith.constant 0 : i32
    %c0_i32_0 = arith.constant 0 : i32
    %c0_i32_1 = arith.constant 0 : i32
    return %c0_i32, %c0_i32_0 : i32, i32
  }
  func.func @transform_10(%arg0: i32) -> (i32, i32) {
    %c0_i32 = arith.constant 0 : i32
    %c0_i32_0 = arith.constant 0 : i32
    %c0_i32_1 = arith.constant 0 : i32
    return %c0_i32, %c0_i32_0 : i32, i32
  }
  func.func @transform_11(%arg0: i32) -> (i32, i32) {
    %c0_i32 = arith.constant 0 : i32
    %c0_i32_0 = arith.constant 0 : i32
    return %arg0, %c0_i32 : i32, i32
  }
}

</mosaic_0001>

<llo_original>
// kernel: tpu_custom_call.1
$region0: #{tpu_custom_call.1}
  #allocation0 [shape = 'u32[]', space=smem, size = 0x4, offset = 0x4, fixed_abs, tag = 'smem constant byte address 0x4 - core index']
  #allocation1 [shape = 'u32[144,128]{1,0:T(1,128)}', space=vmem, size = 0x12000, scoped, tag = 'internal scratch']
  %s0 = inlined_call_operand.vmem [shape: f32[8,128], index: 0, kind: input, shape index: {}]
  %s1 = inlined_call_operand.vmem [shape: f32[32,64], index: 1, kind: input, shape index: {}]
  %s2 = inlined_call_operand.vmem [shape: f32[1,64], index: 2, kind: input, shape index: {}]
  %s3 = inlined_call_operand.vmem [shape: f32[64,16], index: 3, kind: input, shape index: {}]
  %s4 = inlined_call_operand.vmem [shape: f32[1,16], index: 4, kind: input, shape index: {}]
  %s5 = inlined_call_operand.vmem [shape: f32[16,64], index: 5, kind: input, shape index: {}]
  %s6 = inlined_call_operand.vmem [shape: f32[1,64], index: 6, kind: input, shape index: {}]
  %s7 = inlined_call_operand.vmem [shape: f32[64,64], index: 7, kind: input, shape index: {}]
  %s8 = inlined_call_operand.vmem [shape: f32[1,64], index: 8, kind: input, shape index: {}]
  %s9 = inlined_call_operand.vmem [shape: f32[64,32], index: 9, kind: input, shape index: {}]
  %s10 = inlined_call_operand.vmem [shape: f32[1,32], index: 10, kind: input, shape index: {}]
  %s11 = inlined_call_operand.hbm [shape: f32[8,128], index: 11, kind: output, shape index: {}]
  %s12 = sld [smem:[#allocation0]]
  $region54: #{tpu_custom_call.1} parent=0
    _
  %s14 = ssub.s32 1, %s12
  %s15 = scalar_select 0, %s14, %s12
  $region1: #{tpu_custom_call.1} parent=0
    #allocation2 [shape = 'u8[4096]{0}', space=vmem, size = 0x1000, scoped, tag = 'output window, operand 0, single buffered']
    #allocation3 [shape = 's32[1]{0}', space=sflag, size = 0x4, scoped, tag = 'scoped memory for tpu_custom_call.1']
    %16 = vsyncpa [#allocation3], 0
    // Predicated region
    $region2: #{tpu_custom_call.1} parent=1 // pred_check
      _
    $region3: #{tpu_custom_call.1} parent=1 // pred_check_branch
      %18 = sbr.rel (0) target = $region5
    $region4: #{tpu_custom_call.1} parent=1 // pred_region
      _
    $region5: #{tpu_custom_call.1} parent=1 // pred_fallthru
      _
    // Predicated region
    $region6: #{tpu_custom_call.1} parent=1 // pred_check
      _
    $region7: #{tpu_custom_call.1} parent=1 // pred_check_branch
      %20 = sbr.rel (0) target = $region9
    $region8: #{tpu_custom_call.1} parent=1 // pred_region
      _
    $region9: #{tpu_custom_call.1} parent=1 // pred_fallthru
      _
    // Predicated region
    $region10: #{tpu_custom_call.1} parent=1 // pred_check
      _
    $region11: #{tpu_custom_call.1} parent=1 // pred_check_branch
      %22 = sbr.rel (0) target = $region13
    $region12: #{tpu_custom_call.1} parent=1 // pred_region
      _
    $region13: #{tpu_custom_call.1} parent=1 // pred_fallthru
      _
    // Predicated region
    $region14: #{tpu_custom_call.1} parent=1 // pred_check
      _
    $region15: #{tpu_custom_call.1} parent=1 // pred_check_branch
      %24 = sbr.rel (0) target = $region17
    $region16: #{tpu_custom_call.1} parent=1 // pred_region
      _
    $region17: #{tpu_custom_call.1} parent=1 // pred_fallthru
      _
    // Predicated region
    $region18: #{tpu_custom_call.1} parent=1 // pred_check
      _
    $region19: #{tpu_custom_call.1} parent=1 // pred_check_branch
      %26 = sbr.rel (0) target = $region21
    $region20: #{tpu_custom_call.1} parent=1 // pred_region
      _
    $region21: #{tpu_custom_call.1} parent=1 // pred_fallthru
      _
    // Predicated region
    $region22: #{tpu_custom_call.1} parent=1 // pred_check
      _
    $region23: #{tpu_custom_call.1} parent=1 // pred_check_branch
      %28 = sbr.rel (0) target = $region25
    $region24: #{tpu_custom_call.1} parent=1 // pred_region
      _
    $region25: #{tpu_custom_call.1} parent=1 // pred_fallthru
      _
    // Predicated region
    $region26: #{tpu_custom_call.1} parent=1 // pred_check
      _
    $region27: #{tpu_custom_call.1} parent=1 // pred_check_branch
      %30 = sbr.rel (0) target = $region29
    $region28: #{tpu_custom_call.1} parent=1 // pred_region
      _
    $region29: #{tpu_custom_call.1} parent=1 // pred_fallthru
      _
    // Predicated region
    $region30: #{tpu_custom_call.1} parent=1 // pred_check
      _
    $region31: #{tpu_custom_call.1} parent=1 // pred_check_branch
      %32 = sbr.rel (0) target = $region33
    $region32: #{tpu_custom_call.1} parent=1 // pred_region
      _
    $region33: #{tpu_custom_call.1} parent=1 // pred_fallthru
      _
    // Predicated region
    $region34: #{tpu_custom_call.1} parent=1 // pred_check
      _
    $region35: #{tpu_custom_call.1} parent=1 // pred_check_branch
      %34 = sbr.rel (0) target = $region37
    $region36: #{tpu_custom_call.1} parent=1 // pred_region
      _
    $region37: #{tpu_custom_call.1} parent=1 // pred_fallthru
      _
    // Predicated region
    $region38: #{tpu_custom_call.1} parent=1 // pred_check
      _
    $region39: #{tpu_custom_call.1} parent=1 // pred_check_branch
      %36 = sbr.rel (0) target = $region41
    $region40: #{tpu_custom_call.1} parent=1 // pred_region
      _
    $region41: #{tpu_custom_call.1} parent=1 // pred_fallthru
      _
    // Predicated region
    $region42: #{tpu_custom_call.1} parent=1 // pred_check
      _
    $region43: #{tpu_custom_call.1} parent=1 // pred_check_branch
      %38 = sbr.rel (0) target = $region45
    $region44: #{tpu_custom_call.1} parent=1 // pred_region
      _
    $region45: #{tpu_custom_call.1} parent=1 // pred_fallthru
      _
    %v39 = vld [vmem:[%s0] sm:$0xff]
    %41 = vrot.lane.b32.xlu0 %v39, 96
    %v42 = vpop.permute.xlu0 %41
    %43 = vrot.lane.b32.xlu0 %v39, 64
    %v44 = vpop.permute.xlu0 %43
    %45 = vrot.lane.b32.xlu0 %v39, 32
    %v46 = vpop.permute.xlu0 %45
    %v47 = vld [vmem:[%s1] sm:$0xff]
    %v48 = vld [vmem:[%s1 + $0x8] sm:$0xff]
    %v49 = vld [vmem:[%s1 + $0x10] sm:$0xff]
    %v50 = vld [vmem:[%s1 + $0x18] sm:$0xff]
    %v51 = vld [vmem:[%s2] sm:$0x1]
    %v53 = vlaneseq
    %v54 = vshrl.u32 %v53, 7
    %v55 = vsub.s32 0, %v54
    %v56 = vrot.slane %v51, %v55
    %vm58 = vcmask 261120
    %v59 = vsel %vm58, %v39, 0
    %v61 = vsel %vm58, %v42, 0
    %v63 = vsel %vm58, %v44, 0
    %v65 = vsel %vm58, %v46, 0
    %67 = vmatprep.subr.mxu0 0.0
    %68 = vmatpush1.msra.mxu0 %v47
    %69 = vmatprep.subr.mxu0 0.0
    %70 = vmatpush1.msra.mxu0 %v48
    %71 = vmatprep.subr.mxu0 0.0
    %72 = vmatpush1.msra.mxu0 %v49
    %73 = vmatprep.subr.mxu0 0.0
    %74 = vmatpush1.msra.mxu0 %v50
    %75 = vmatprep.subr.mxu0 0.0
    %76 = vmatpush1.msra.mxu0 0.0
    %77 = vmatprep.subr.mxu0 0.0
    %78 = vmatpush1.msra.mxu0 0.0
    %79 = vmatprep.subr.mxu0 0.0
    %80 = vmatpush1.msra.mxu0 0.0
    %81 = vmatprep.subr.mxu0 0.0
    %82 = vmatpush1.msra.mxu0 0.0
    %83 = vmatprep.subr.mxu0 0.0
    %84 = vmatpush1.msra.mxu0 0.0
    %85 = vmatprep.subr.mxu0 0.0
    %86 = vmatpush1.msra.mxu0 0.0
    %87 = vmatprep.subr.mxu0 0.0
    %88 = vmatpush1.msra.mxu0 0.0
    %89 = vmatprep.subr.mxu0 0.0
    %90 = vmatpush1.msra.mxu0 0.0
    %91 = vmatprep.subr.mxu0 0.0
    %92 = vmatpush1.msra.mxu0 0.0
    %93 = vmatprep.subr.mxu0 0.0
    %94 = vmatpush1.msra.mxu0 0.0
    %95 = vmatprep.subr.mxu0 0.0
    %96 = vmatpush1.msra.mxu0 0.0
    %97 = vmatprep.subr.mxu0 0.0
    %98 = vmatpush1.msra.mxu0 0.0
    %99 = vmatprep.subr.mxu0 0.0
    %100 = vmatpush1.msra.mxu0 0.0
    %101 = vmatprep.subr.mxu0 0.0
    %102 = vmatpush1.msra.mxu0 0.0
    %103 = vmatprep.subr.mxu0 0.0
    %104 = vmatpush1.msra.mxu0 0.0
    %105 = vmatprep.subr.mxu0 0.0
    %106 = vmatpush1.msra.mxu0 0.0
    %107 = vmatprep.subr.mxu0 0.0
    %108 = vmatpush1.msra.mxu0 0.0
    %109 = vmatprep.subr.mxu0 0.0
    %110 = vmatpush1.msra.mxu0 0.0
    %111 = vmatprep.subr.mxu0 0.0
    %112 = vmatpush1.msra.mxu0 0.0
    %113 = vmatprep.subr.mxu0 0.0
    %114 = vmatpush1.msra.mxu0 0.0
    %115 = vmatprep.subr.mxu0 0.0
    %116 = vmatpush1.msra.mxu0 0.0
    %117 = vmatprep.subr.mxu0 0.0
    %118 = vmatpush1.msra.mxu0 0.0
    %119 = vmatprep.subr.mxu0 0.0
    %120 = vmatpush1.msra.mxu0 0.0
    %121 = vmatprep.subr.mxu0 0.0
    %122 = vmatpush1.msra.mxu0 0.0
    %123 = vmatprep.subr.mxu0 0.0
    %124 = vmatpush1.msra.mxu0 0.0
    %125 = vmatprep.subr.mxu0 0.0
    %126 = vmatpush1.msra.mxu0 0.0
    %127 = vmatprep.subr.mxu0 0.0
    %128 = vmatpush1.msra.mxu0 0.0
    %129 = vmatprep.subr.mxu0 0.0
    %130 = vmatpush1.msra.mxu0 0.0
    %131 = vmatprep.mubr.f32.mxu0 0.0
    %132 = vmatmul.mubr.f32.gmra.mrb[0].mxu0 %v59
    %v133 = vpop.f32.mrb[0].mxu0
    %v134 = vadd.f32 %v56, %v133
    %v135 = vpop.f32.mrb[0].mxu0
    %136 = vmatprep.mubr.f32.mxu0 0.0
    %137 = vmatmul.mubr.f32.gmra.mrb[0].mxu0 %v61
    %v138 = vpop.f32.mrb[0].mxu0
    %v139 = vadd.f32 %v56, %v138
    %v140 = vpop.f32.mrb[0].mxu0
    %141 = vmatprep.mubr.f32.mxu0 0.0
    %142 = vmatmul.mubr.f32.gmra.mrb[0].mxu0 %v63
    %v143 = vpop.f32.mrb[0].mxu0
    %v144 = vadd.f32 %v56, %v143
    %v145 = vpop.f32.mrb[0].mxu0
    %146 = vmatprep.mubr.f32.mxu0 0.0
    %147 = vmatmul.mubr.f32.gmra.mrb[0].mxu0 %v65
    %v148 = vpop.f32.mrb[0].mxu0
    %v149 = vadd.f32 %v56, %v148
    %v150 = vpop.f32.mrb[0].mxu0
    %151 = vdwg.mxu0
    %v152 = vmax.f32 %v134, 0.0
    %v153 = vmax.f32 %v139, 0.0
    %v154 = vmax.f32 %v144, 0.0
    %v155 = vmax.f32 %v149, 0.0
    %v156 = vld [vmem:[%s3] sm:$0xff]
    %v157 = vld [vmem:[%s3 + $0x8] sm:$0xff]
    %v158 = vld [vmem:[%s3 + $0x10] sm:$0xff]
    %v159 = vld [vmem:[%s3 + $0x18] sm:$0xff]
    %v160 = vld [vmem:[%s3 + $0x20] sm:$0xff]
    %v161 = vld [vmem:[%s3 + $0x28] sm:$0xff]
    %v162 = vld [vmem:[%s3 + $0x30] sm:$0xff]
    %v163 = vld [vmem:[%s3 + $0x38] sm:$0xff]
    %v164 = vld [vmem:[%s4] sm:$0x1]
    %v166 = vlaneseq
    %v167 = vshrl.u32 %v166, 7
    %v168 = vsub.s32 0, %v167
    %v169 = vrot.slane %v164, %v168
    %vm171 = vcmask 523264
    %v173 = vsel %vm171, %v152, 0
    %v176 = vsel %vm171, %v153, 0
    %v179 = vsel %vm171, %v154, 0
    %v182 = vsel %vm171, %v155, 0
    %184 = vmatprep.subr.mxu0 0.0
    %185 = vmatpush1.msra.mxu0 %v156
    %186 = vmatprep.subr.mxu0 0.0
    %187 = vmatpush1.msra.mxu0 %v157
    %188 = vmatprep.subr.mxu0 0.0
    %189 = vmatpush1.msra.mxu0 %v158
    %190 = vmatprep.subr.mxu0 0.0
    %191 = vmatpush1.msra.mxu0 %v159
    %192 = vmatprep.subr.mxu0 0.0
    %193 = vmatpush1.msra.mxu0 %v160
    %194 = vmatprep.subr.mxu0 0.0
    %195 = vmatpush1.msra.mxu0 %v161
    %196 = vmatprep.subr.mxu0 0.0
    %197 = vmatpush1.msra.mxu0 %v162
    %198 = vmatprep.subr.mxu0 0.0
    %199 = vmatpush1.msra.mxu0 %v163
    %200 = vmatprep.subr.mxu0 0.0
    %201 = vmatpush1.msra.mxu0 0.0
    %202 = vmatprep.subr.mxu0 0.0
    %203 = vmatpush1.msra.mxu0 0.0
    %204 = vmatprep.subr.mxu0 0.0
    %205 = vmatpush1.msra.mxu0 0.0
    %206 = vmatprep.subr.mxu0 0.0
    %207 = vmatpush1.msra.mxu0 0.0
    %208 = vmatprep.subr.mxu0 0.0
    %209 = vmatpush1.msra.mxu0 0.0
    %210 = vmatprep.subr.mxu0 0.0
    %211 = vmatpush1.msra.mxu0 0.0
    %212 = vmatprep.subr.mxu0 0.0
    %213 = vmatpush1.msra.mxu0 0.0
    %214 = vmatprep.subr.mxu0 0.0
    %215 = vmatpush1.msra.mxu0 0.0
    %216 = vmatprep.subr.mxu0 0.0
    %217 = vmatpush1.msra.mxu0 0.0
    %218 = vmatprep.subr.mxu0 0.0
    %219 = vmatpush1.msra.mxu0 0.0
    %220 = vmatprep.subr.mxu0 0.0
    %221 = vmatpush1.msra.mxu0 0.0
    %222 = vmatprep.subr.mxu0 0.0
    %223 = vmatpush1.msra.mxu0 0.0
    %224 = vmatprep.subr.mxu0 0.0
    %225 = vmatpush1.msra.mxu0 0.0
    %226 = vmatprep.subr.mxu0 0.0
    %227 = vmatpush1.msra.mxu0 0.0
    %228 = vmatprep.subr.mxu0 0.0
    %229 = vmatpush1.msra.mxu0 0.0
    %230 = vmatprep.subr.mxu0 0.0
    %231 = vmatpush1.msra.mxu0 0.0
    %232 = vmatprep.subr.mxu0 0.0
    %233 = vmatpush1.msra.mxu0 0.0
    %234 = vmatprep.subr.mxu0 0.0
    %235 = vmatpush1.msra.mxu0 0.0
    %236 = vmatprep.subr.mxu0 0.0
    %237 = vmatpush1.msra.mxu0 0.0
    %238 = vmatprep.subr.mxu0 0.0
    %239 = vmatpush1.msra.mxu0 0.0
    %240 = vmatprep.subr.mxu0 0.0
    %241 = vmatpush1.msra.mxu0 0.0
    %242 = vmatprep.subr.mxu0 0.0
    %243 = vmatpush1.msra.mxu0 0.0
    %244 = vmatprep.subr.mxu0 0.0
    %245 = vmatpush1.msra.mxu0 0.0
    %246 = vmatprep.subr.mxu0 0.0
    %247 = vmatpush1.msra.mxu0 0.0
    %248 = vmatprep.mubr.f32.mxu0 0.0
    %249 = vmatmul.mubr.f32.gmra.mrb[0].mxu0 %v173
    %v250 = vpop.f32.mrb[0].mxu0
    %v251 = vadd.f32 %v169, %v250
    %v252 = vpop.f32.mrb[0].mxu0
    %253 = vmatprep.mubr.f32.mxu0 0.0
    %254 = vmatmul.mubr.f32.gmra.mrb[0].mxu0 %v176
    %v255 = vpop.f32.mrb[0].mxu0
    %v256 = vadd.f32 %v169, %v255
    %v257 = vpop.f32.mrb[0].mxu0
    %258 = vmatprep.mubr.f32.mxu0 0.0
    %259 = vmatmul.mubr.f32.gmra.mrb[0].mxu0 %v179
    %v260 = vpop.f32.mrb[0].mxu0
    %v261 = vadd.f32 %v169, %v260
    %v262 = vpop.f32.mrb[0].mxu0
    %263 = vmatprep.mubr.f32.mxu0 0.0
    %264 = vmatmul.mubr.f32.gmra.mrb[0].mxu0 %v182
    %v265 = vpop.f32.mrb[0].mxu0
    %v266 = vadd.f32 %v169, %v265
    %v267 = vpop.f32.mrb[0].mxu0
    %268 = vdwg.mxu0
    %v269 = vmul.f32 %v251, %v251
    %v270 = vmul.f32 %v256, %v256
    %v271 = vmul.f32 %v261, %v261
    %v272 = vmul.f32 %v266, %v266
    %vm273 = vcmask 130048
    %v274 = vsel %vm273, %v269, 0.0
    %275 = vadd.xlane.f32.xlu0 %v274
    %v276 = vpop.xlane.xlu0 %275
    %v277 = vsel %vm273, %v270, 0.0
    %278 = vadd.xlane.f32.xlu0 %v277
    %v279 = vpop.xlane.xlu0 %278
    %v280 = vsel %vm273, %v271, 0.0
    %281 = vadd.xlane.f32.xlu0 %v280
    %v282 = vpop.xlane.xlu0 %281
    %v283 = vsel %vm273, %v272, 0.0
    %284 = vadd.xlane.f32.xlu0 %v283
    %v285 = vpop.xlane.xlu0 %284
    %v286 = vmax.f32 %v276, 1e-24
    %v287 = vmax.f32 %v279, 1e-24
    %v288 = vmax.f32 %v282, 1e-24
    %v289 = vmax.f32 %v285, 1e-24
    %v290 = vrsqrt.pop %v286
    %v291 = vrsqrt.pop %v287
    %v292 = vrsqrt.pop %v288
    %v293 = vrsqrt.pop %v289
    %v294 = vmul.f32 %v251, %v290
    %v295 = vmul.f32 %v256, %v291
    %v296 = vmul.f32 %v261, %v292
    %v297 = vmul.f32 %v266, %v293
    %v298 = vld [vmem:[%s5] sm:$0xff]
    %v299 = vld [vmem:[%s5 + $0x8] sm:$0xff]
    %v300 = vld [vmem:[%s6] sm:$0x1]
    %v302 = vlaneseq
    %v303 = vshrl.u32 %v302, 7
    %v304 = vsub.s32 0, %v303
    %v305 = vrot.slane %v300, %v304
    %v308 = vsel %vm273, %v294, 0
    %v311 = vsel %vm273, %v295, 0
    %v314 = vsel %vm273, %v296, 0
    %v317 = vsel %vm273, %v297, 0
    %319 = vmatprep.subr.mxu0 0.0
    %320 = vmatpush1.msra.mxu0 %v298
    %321 = vmatprep.subr.mxu0 0.0
    %322 = vmatpush1.msra.mxu0 %v299
    %323 = vmatprep.subr.mxu0 0.0
    %324 = vmatpush1.msra.mxu0 0.0
    %325 = vmatprep.subr.mxu0 0.0
    %326 = vmatpush1.msra.mxu0 0.0
    %327 = vmatprep.subr.mxu0 0.0
    %328 = vmatpush1.msra.mxu0 0.0
    %329 = vmatprep.subr.mxu0 0.0
    %330 = vmatpush1.msra.mxu0 0.0
    %331 = vmatprep.subr.mxu0 0.0
    %332 = vmatpush1.msra.mxu0 0.0
    %333 = vmatprep.subr.mxu0 0.0
    %334 = vmatpush1.msra.mxu0 0.0
    %335 = vmatprep.subr.mxu0 0.0
    %336 = vmatpush1.msra.mxu0 0.0
    %337 = vmatprep.subr.mxu0 0.0
    %338 = vmatpush1.msra.mxu0 0.0
    %339 = vmatprep.subr.mxu0 0.0
    %340 = vmatpush1.msra.mxu0 0.0
    %341 = vmatprep.subr.mxu0 0.0
    %342 = vmatpush1.msra.mxu0 0.0
    %343 = vmatprep.subr.mxu0 0.0
    %344 = vmatpush1.msra.mxu0 0.0
    %345 = vmatprep.subr.mxu0 0.0
    %346 = vmatpush1.msra.mxu0 0.0
    %347 = vmatprep.subr.mxu0 0.0
    %348 = vmatpush1.msra.mxu0 0.0
    %349 = vmatprep.subr.mxu0 0.0
    %350 = vmatpush1.msra.mxu0 0.0
    %351 = vmatprep.subr.mxu0 0.0
    %352 = vmatpush1.msra.mxu0 0.0
    %353 = vmatprep.subr.mxu0 0.0
    %354 = vmatpush1.msra.mxu0 0.0
    %355 = vmatprep.subr.mxu0 0.0
    %356 = vmatpush1.msra.mxu0 0.0
    %357 = vmatprep.subr.mxu0 0.0
    %358 = vmatpush1.msra.mxu0 0.0
    %359 = vmatprep.subr.mxu0 0.0
    %360 = vmatpush1.msra.mxu0 0.0
    %361 = vmatprep.subr.mxu0 0.0
    %362 = vmatpush1.msra.mxu0 0.0
    %363 = vmatprep.subr.mxu0 0.0
    %364 = vmatpush1.msra.mxu0 0.0
    %365 = vmatprep.subr.mxu0 0.0
    %366 = vmatpush1.msra.mxu0 0.0
    %367 = vmatprep.subr.mxu0 0.0
    %368 = vmatpush1.msra.mxu0 0.0
    %369 = vmatprep.subr.mxu0 0.0
    %370 = vmatpush1.msra.mxu0 0.0
    %371 = vmatprep.subr.mxu0 0.0
    %372 = vmatpush1.msra.mxu0 0.0
    %373 = vmatprep.subr.mxu0 0.0
    %374 = vmatpush1.msra.mxu0 0.0
    %375 = vmatprep.subr.mxu0 0.0
    %376 = vmatpush1.msra.mxu0 0.0
    %377 = vmatprep.subr.mxu0 0.0
    %378 = vmatpush1.msra.mxu0 0.0
    %379 = vmatprep.subr.mxu0 0.0
    %380 = vmatpush1.msra.mxu0 0.0
    %381 = vmatprep.subr.mxu0 0.0
    %382 = vmatpush1.msra.mxu0 0.0
    %383 = vmatprep.mubr.f32.mxu0 0.0
    %384 = vmatmul.mubr.f32.gmra.mrb[0].mxu0 %v308
    %v385 = vpop.f32.mrb[0].mxu0
    %v386 = vadd.f32 %v305, %v385
    %v387 = vpop.f32.mrb[0].mxu0
    %388 = vmatprep.mubr.f32.mxu0 0.0
    %389 = vmatmul.mubr.f32.gmra.mrb[0].mxu0 %v311
    %v390 = vpop.f32.mrb[0].mxu0
    %v391 = vadd.f32 %v305, %v390
    %v392 = vpop.f32.mrb[0].mxu0
    %393 = vmatprep.mubr.f32.mxu0 0.0
    %394 = vmatmul.mubr.f32.gmra.mrb[0].mxu0 %v314
    %v395 = vpop.f32.mrb[0].mxu0
    %v396 = vadd.f32 %v305, %v395
    %v397 = vpop.f32.mrb[0].mxu0
    %398 = vmatprep.mubr.f32.mxu0 0.0
    %399 = vmatmul.mubr.f32.gmra.mrb[0].mxu0 %v317
    %v400 = vpop.f32.mrb[0].mxu0
    %v401 = vadd.f32 %v305, %v400
    %v402 = vpop.f32.mrb[0].mxu0
    %403 = vdwg.mxu0
    %v404 = vmax.f32 %v386, 0.0
    %v405 = vmax.f32 %v391, 0.0
    %v406 = vmax.f32 %v396, 0.0
    %v407 = vmax.f32 %v401, 0.0
    %v408 = vld [vmem:[%s7] sm:$0xff]
    %v409 = vld [vmem:[%s7 + $0x8] sm:$0xff]
    %v410 = vld [vmem:[%s7 + $0x10] sm:$0xff]
    %v411 = vld [vmem:[%s7 + $0x18] sm:$0xff]
    %v412 = vld [vmem:[%s7 + $0x20] sm:$0xff]
    %v413 = vld [vmem:[%s7 + $0x28] sm:$0xff]
    %v414 = vld [vmem:[%s7 + $0x30] sm:$0xff]
    %v415 = vld [vmem:[%s7 + $0x38] sm:$0xff]
    %v416 = vld [vmem:[%s8] sm:$0x1]
    %v418 = vlaneseq
    %v419 = vshrl.u32 %v418, 7
    %v420 = vsub.s32 0, %v419
    %v421 = vrot.slane %v416, %v420
    %v424 = vsel %vm171, %v404, 0
    %v427 = vsel %vm171, %v405, 0
    %v430 = vsel %vm171, %v406, 0
    %v433 = vsel %vm171, %v407, 0
    %435 = vmatprep.subr.mxu0 0.0
    %436 = vmatpush1.msra.mxu0 %v408
    %437 = vmatprep.subr.mxu0 0.0
    %438 = vmatpush1.msra.mxu0 %v409
    %439 = vmatprep.subr.mxu0 0.0
    %440 = vmatpush1.msra.mxu0 %v410
    %441 = vmatprep.subr.mxu0 0.0
    %442 = vmatpush1.msra.mxu0 %v411
    %443 = vmatprep.subr.mxu0 0.0
    %444 = vmatpush1.msra.mxu0 %v412
    %445 = vmatprep.subr.mxu0 0.0
    %446 = vmatpush1.msra.mxu0 %v413
    %447 = vmatprep.subr.mxu0 0.0
    %448 = vmatpush1.msra.mxu0 %v414
    %449 = vmatprep.subr.mxu0 0.0
    %450 = vmatpush1.msra.mxu0 %v415
    %451 = vmatprep.subr.mxu0 0.0
    %452 = vmatpush1.msra.mxu0 0.0
    %453 = vmatprep.subr.mxu0 0.0
    %454 = vmatpush1.msra.mxu0 0.0
    %455 = vmatprep.subr.mxu0 0.0
    %456 = vmatpush1.msra.mxu0 0.0
    %457 = vmatprep.subr.mxu0 0.0
    %458 = vmatpush1.msra.mxu0 0.0
    %459 = vmatprep.subr.mxu0 0.0
    %460 = vmatpush1.msra.mxu0 0.0
    %461 = vmatprep.subr.mxu0 0.0
    %462 = vmatpush1.msra.mxu0 0.0
    %463 = vmatprep.subr.mxu0 0.0
    %464 = vmatpush1.msra.mxu0 0.0
    %465 = vmatprep.subr.mxu0 0.0
    %466 = vmatpush1.msra.mxu0 0.0
    %467 = vmatprep.subr.mxu0 0.0
    %468 = vmatpush1.msra.mxu0 0.0
    %469 = vmatprep.subr.mxu0 0.0
    %470 = vmatpush1.msra.mxu0 0.0
    %471 = vmatprep.subr.mxu0 0.0
    %472 = vmatpush1.msra.mxu0 0.0
    %473 = vmatprep.subr.mxu0 0.0
    %474 = vmatpush1.msra.mxu0 0.0
    %475 = vmatprep.subr.mxu0 0.0
    %476 = vmatpush1.msra.mxu0 0.0
    %477 = vmatprep.subr.mxu0 0.0
    %478 = vmatpush1.msra.mxu0 0.0
    %479 = vmatprep.subr.mxu0 0.0
    %480 = vmatpush1.msra.mxu0 0.0
    %481 = vmatprep.subr.mxu0 0.0
    %482 = vmatpush1.msra.mxu0 0.0
    %483 = vmatprep.subr.mxu0 0.0
    %484 = vmatpush1.msra.mxu0 0.0
    %485 = vmatprep.subr.mxu0 0.0
    %486 = vmatpush1.msra.mxu0 0.0
    %487 = vmatprep.subr.mxu0 0.0
    %488 = vmatpush1.msra.mxu0 0.0
    %489 = vmatprep.subr.mxu0 0.0
    %490 = vmatpush1.msra.mxu0 0.0
    %491 = vmatprep.subr.mxu0 0.0
    %492 = vmatpush1.msra.mxu0 0.0
    %493 = vmatprep.subr.mxu0 0.0
    %494 = vmatpush1.msra.mxu0 0.0
    %495 = vmatprep.subr.mxu0 0.0
    %496 = vmatpush1.msra.mxu0 0.0
    %497 = vmatprep.subr.mxu0 0.0
    %498 = vmatpush1.msra.mxu0 0.0
    %499 = vmatprep.mubr.f32.mxu0 0.0
    %500 = vmatmul.mubr.f32.gmra.mrb[0].mxu0 %v424
    %v501 = vpop.f32.mrb[0].mxu0
    %v502 = vadd.f32 %v421, %v501
    %v503 = vpop.f32.mrb[0].mxu0
    %504 = vmatprep.mubr.f32.mxu0 0.0
    %505 = vmatmul.mubr.f32.gmra.mrb[0].mxu0 %v427
    %v506 = vpop.f32.mrb[0].mxu0
    %v507 = vadd.f32 %v421, %v506
    %v508 = vpop.f32.mrb[0].mxu0
    %509 = vmatprep.mubr.f32.mxu0 0.0
    %510 = vmatmul.mubr.f32.gmra.mrb[0].mxu0 %v430
    %v511 = vpop.f32.mrb[0].mxu0
    %v512 = vadd.f32 %v421, %v511
    %v513 = vpop.f32.mrb[0].mxu0
    %514 = vmatprep.mubr.f32.mxu0 0.0
    %515 = vmatmul.mubr.f32.gmra.mrb[0].mxu0 %v433
    %v516 = vpop.f32.mrb[0].mxu0
    %v517 = vadd.f32 %v421, %v516
    %v518 = vpop.f32.mrb[0].mxu0
    %519 = vdwg.mxu0
    %v520 = vmax.f32 %v502, 0.0
    %v521 = vmax.f32 %v507, 0.0
    %v522 = vmax.f32 %v512, 0.0
    %v523 = vmax.f32 %v517, 0.0
    %v524 = vld [vmem:[%s9] sm:$0xff]
    %v525 = vld [vmem:[%s9 + $0x8] sm:$0xff]
    %v526 = vld [vmem:[%s9 + $0x10] sm:$0xff]
    %v527 = vld [vmem:[%s9 + $0x18] sm:$0xff]
    %v528 = vld [vmem:[%s9 + $0x20] sm:$0xff]
    %v529 = vld [vmem:[%s9 + $0x28] sm:$0xff]
    %v530 = vld [vmem:[%s9 + $0x30] sm:$0xff]
    %v531 = vld [vmem:[%s9 + $0x38] sm:$0xff]
    %v532 = vld [vmem:[%s10] sm:$0x1]
    %v534 = vlaneseq
    %v535 = vshrl.u32 %v534, 7
    %v536 = vsub.s32 0, %v535
    %v537 = vrot.slane %v532, %v536
    %v540 = vsel %vm171, %v520, 0
    %v543 = vsel %vm171, %v521, 0
    %v546 = vsel %vm171, %v522, 0
    %v549 = vsel %vm171, %v523, 0
    %551 = vmatprep.subr.mxu0 0.0
    %552 = vmatpush1.msra.mxu0 %v524
    %553 = vmatprep.subr.mxu0 0.0
    %554 = vmatpush1.msra.mxu0 %v525
    %555 = vmatprep.subr.mxu0 0.0
    %556 = vmatpush1.msra.mxu0 %v526
    %557 = vmatprep.subr.mxu0 0.0
    %558 = vmatpush1.msra.mxu0 %v527
    %559 = vmatprep.subr.mxu0 0.0
    %560 = vmatpush1.msra.mxu0 %v528
    %561 = vmatprep.subr.mxu0 0.0
    %562 = vmatpush1.msra.mxu0 %v529
    %563 = vmatprep.subr.mxu0 0.0
    %564 = vmatpush1.msra.mxu0 %v530
    %565 = vmatprep.subr.mxu0 0.0
    %566 = vmatpush1.msra.mxu0 %v531
    %567 = vmatprep.subr.mxu0 0.0
    %568 = vmatpush1.msra.mxu0 0.0
    %569 = vmatprep.subr.mxu0 0.0
    %570 = vmatpush1.msra.mxu0 0.0
    %571 = vmatprep.subr.mxu0 0.0
    %572 = vmatpush1.msra.mxu0 0.0
    %573 = vmatprep.subr.mxu0 0.0
    %574 = vmatpush1.msra.mxu0 0.0
    %575 = vmatprep.subr.mxu0 0.0
    %576 = vmatpush1.msra.mxu0 0.0
    %577 = vmatprep.subr.mxu0 0.0
    %578 = vmatpush1.msra.mxu0 0.0
    %579 = vmatprep.subr.mxu0 0.0
    %580 = vmatpush1.msra.mxu0 0.0
    %581 = vmatprep.subr.mxu0 0.0
    %582 = vmatpush1.msra.mxu0 0.0
    %583 = vmatprep.subr.mxu0 0.0
    %584 = vmatpush1.msra.mxu0 0.0
    %585 = vmatprep.subr.mxu0 0.0
    %586 = vmatpush1.msra.mxu0 0.0
    %587 = vmatprep.subr.mxu0 0.0
    %588 = vmatpush1.msra.mxu0 0.0
    %589 = vmatprep.subr.mxu0 0.0
    %590 = vmatpush1.msra.mxu0 0.0
    %591 = vmatprep.subr.mxu0 0.0
    %592 = vmatpush1.msra.mxu0 0.0
    %593 = vmatprep.subr.mxu0 0.0
    %594 = vmatpush1.msra.mxu0 0.0
    %595 = vmatprep.subr.mxu0 0.0
    %596 = vmatpush1.msra.mxu0 0.0
    %597 = vmatprep.subr.mxu0 0.0
    %598 = vmatpush1.msra.mxu0 0.0
    %599 = vmatprep.subr.mxu0 0.0
    %600 = vmatpush1.msra.mxu0 0.0
    %601 = vmatprep.subr.mxu0 0.0
    %602 = vmatpush1.msra.mxu0 0.0
    %603 = vmatprep.subr.mxu0 0.0
    %604 = vmatpush1.msra.mxu0 0.0
    %605 = vmatprep.subr.mxu0 0.0
    %606 = vmatpush1.msra.mxu0 0.0
    %607 = vmatprep.subr.mxu0 0.0
    %608 = vmatpush1.msra.mxu0 0.0
    %609 = vmatprep.subr.mxu0 0.0
    %610 = vmatpush1.msra.mxu0 0.0
    %611 = vmatprep.subr.mxu0 0.0
    %612 = vmatpush1.msra.mxu0 0.0
    %613 = vmatprep.subr.mxu0 0.0
    %614 = vmatpush1.msra.mxu0 0.0
    %615 = vmatprep.mubr.f32.mxu0 0.0
    %616 = vmatmul.mubr.f32.gmra.mrb[0].mxu0 %v540
    %v617 = vpop.f32.mrb[0].mxu0
    %v618 = vadd.f32 %v537, %v617
    %v619 = vpop.f32.mrb[0].mxu0
    %620 = vmatprep.mubr.f32.mxu0 0.0
    %621 = vmatmul.mubr.f32.gmra.mrb[0].mxu0 %v543
    %v622 = vpop.f32.mrb[0].mxu0
    %v623 = vadd.f32 %v537, %v622
    %v624 = vpop.f32.mrb[0].mxu0
    %625 = vmatprep.mubr.f32.mxu0 0.0
    %626 = vmatmul.mubr.f32.gmra.mrb[0].mxu0 %v546
    %v627 = vpop.f32.mrb[0].mxu0
    %v628 = vadd.f32 %v537, %v627
    %v629 = vpop.f32.mrb[0].mxu0
    %630 = vmatprep.mubr.f32.mxu0 0.0
    %631 = vmatmul.mubr.f32.gmra.mrb[0].mxu0 %v549
    %v632 = vpop.f32.mrb[0].mxu0
    %v633 = vadd.f32 %v537, %v632
    %v634 = vpop.f32.mrb[0].mxu0
    %635 = vdwg.mxu0
    %636 = vst.msk [vmem:[#allocation2] sm:$0xff] %vm58, %v618
    %638 = vrot.lane.b32.xlu0 %v623, 32
    %v639 = vpop.permute.xlu0 %638
    %vm641 = vcmask 523520
    %642 = vst.msk [vmem:[#allocation2] sm:$0xff] %vm641, %v639
    %644 = vrot.lane.b32.xlu0 %v628, 64
    %v645 = vpop.permute.xlu0 %644
    %vm647 = vcmask 785920
    %648 = vst.msk [vmem:[#allocation2] sm:$0xff] %vm647, %v645
    %650 = vrot.lane.b32.xlu0 %v633, 96
    %v651 = vpop.permute.xlu0 %650
    %vm653 = vcmask 1048320
    %654 = vst.msk [vmem:[#allocation2] sm:$0xff] %vm653, %v651
    // Predicated region
    $region46: #{tpu_custom_call.1} parent=1 // pred_check
      _
    $region47: #{tpu_custom_call.1} parent=1 // pred_check_branch
      %656 = sbr.rel (0) target = $region49
    $region48: #{tpu_custom_call.1} parent=1 // pred_region
      %s658 = ssub.s32 128, 128
      %659 = vsyncadd [#allocation3], %s658
      %s661 = sshll.u32 [#allocation2], 4
      %s662 = int_to_ptr.vmem [resolvable:$true] %s661
      %664 = dma.vmem_to_hbm [thread:$0]  %s662, 128, %s11, [#allocation3]
    $region49: #{tpu_custom_call.1} parent=1 // pred_fallthru
      _
    // Predicated region
    $region50: #{tpu_custom_call.1} parent=1 // pred_check
      _
    $region51: #{tpu_custom_call.1} parent=1 // pred_check_branch
      %666 = sbr.rel (0) target = $region53
    $region52: #{tpu_custom_call.1} parent=1 // pred_region
      %667 = dma.done [#allocation3], 128
    $region53: #{tpu_custom_call.1} parent=1 // pred_fallthru
      _
    %668 = vsyncpa [#allocation3], 1

// kernel: tpu_custom_call.1
$region0: #{tpu_custom_call.1}
  #allocation0 [shape = 'u32[]', space=smem, size = 0x4, offset = 0x4, fixed_abs, tag = 'smem constant byte address 0x4 - core index']
  #allocation1 [shape = 'u32[144,128]{1,0:T(1,128)}', space=vmem, size = 0x12000, scoped, tag = 'internal scratch']
  %s0 = inlined_call_operand.vmem [shape: f32[8,32], index: 0, kind: input, shape index: {}]
  %s1 = inlined_call_operand.vmem [shape: f32[32,64], index: 1, kind: input, shape index: {}]
  %s2 = inlined_call_operand.vmem [shape: f32[1,64], index: 2, kind: input, shape index: {}]
  %s3 = inlined_call_operand.vmem [shape: f32[64,16], index: 3, kind: input, shape index: {}]
  %s4 = inlined_call_operand.vmem [shape: f32[1,16], index: 4, kind: input, shape index: {}]
  %s5 = inlined_call_operand.vmem [shape: f32[16,64], index: 5, kind: input, shape index: {}]
  %s6 = inlined_call_operand.vmem [shape: f32[1,64], index: 6, kind: input, shape index: {}]
  %s7 = inlined_call_operand.vmem [shape: f32[64,64], index: 7, kind: input, shape index: {}]
  %s8 = inlined_call_operand.vmem [shape: f32[1,64], index: 8, kind: input, shape index: {}]
  %s9 = inlined_call_operand.vmem [shape: f32[64,32], index: 9, kind: input, shape index: {}]
  %s10 = inlined_call_operand.vmem [shape: f32[1,32], index: 10, kind: input, shape index: {}]
  %s11 = inlined_call_operand.hbm [shape: f32[8,32], index: 11, kind: output, shape index: {}]
  %s12 = sld [smem:[#allocation0]]
  $region54: #{tpu_custom_call.1} parent=0
    _
  %s14 = ssub.s32 1, %s12
  %s15 = scalar_select 0, %s14, %s12
  $region1: #{tpu_custom_call.1} parent=0
    #allocation2 [shape = 'u8[4096]{0}', space=vmem, size = 0x1000, scoped, tag = 'output window, operand 0, single buffered']
    #allocation3 [shape = 's32[1]{0}', space=sflag, size = 0x4, scoped, tag = 'scoped memory for tpu_custom_call.1']
    %16 = vsyncpa [#allocation3], 0
    // Predicated region
    $region2: #{tpu_custom_call.1} parent=1 // pred_check
      _
    $region3: #{tpu_custom_call.1} parent=1 // pred_check_branch
      %18 = sbr.rel (0) target = $region5
    $region4: #{tpu_custom_call.1} parent=1 // pred_region
      _
    $region5: #{tpu_custom_call.1} parent=1 // pred_fallthru
      _
    // Predicated region
    $region6: #{tpu_custom_call.1} parent=1 // pred_check
      _
    $region7: #{tpu_custom_call.1} parent=1 // pred_check_branch
      %20 = sbr.rel (0) target = $region9
    $region8: #{tpu_custom_call.1} parent=1 // pred_region
      _
    $region9: #{tpu_custom_call.1} parent=1 // pred_fallthru
      _
    // Predicated region
    $region10: #{tpu_custom_call.1} parent=1 // pred_check
      _
    $region11: #{tpu_custom_call.1} parent=1 // pred_check_branch
      %22 = sbr.rel (0) target = $region13
    $region12: #{tpu_custom_call.1} parent=1 // pred_region
      _
    $region13: #{tpu_custom_call.1} parent=1 // pred_fallthru
      _
    // Predicated region
    $region14: #{tpu_custom_call.1} parent=1 // pred_check
      _
    $region15: #{tpu_custom_call.1} parent=1 // pred_check_branch
      %24 = sbr.rel (0) target = $region17
    $region16: #{tpu_custom_call.1} parent=1 // pred_region
      _
    $region17: #{tpu_custom_call.1} parent=1 // pred_fallthru
      _
    // Predicated region
    $region18: #{tpu_custom_call.1} parent=1 // pred_check
      _
    $region19: #{tpu_custom_call.1} parent=1 // pred_check_branch
      %26 = sbr.rel (0) target = $region21
    $region20: #{tpu_custom_call.1} parent=1 // pred_region
      _
    $region21: #{tpu_custom_call.1} parent=1 // pred_fallthru
      _
    // Predicated region
    $region22: #{tpu_custom_call.1} parent=1 // pred_check
      _
    $region23: #{tpu_custom_call.1} parent=1 // pred_check_branch
      %28 = sbr.rel (0) target = $region25
    $region24: #{tpu_custom_call.1} parent=1 // pred_region
      _
    $region25: #{tpu_custom_call.1} parent=1 // pred_fallthru
      _
    // Predicated region
    $region26: #{tpu_custom_call.1} parent=1 // pred_check
      _
    $region27: #{tpu_custom_call.1} parent=1 // pred_check_branch
      %30 = sbr.rel (0) target = $region29
    $region28: #{tpu_custom_call.1} parent=1 // pred_region
      _
    $region29: #{tpu_custom_call.1} parent=1 // pred_fallthru
      _
    // Predicated region
    $region30: #{tpu_custom_call.1} parent=1 // pred_check
      _
    $region31: #{tpu_custom_call.1} parent=1 // pred_check_branch
      %32 = sbr.rel (0) target = $region33
    $region32: #{tpu_custom_call.1} parent=1 // pred_region
      _
    $region33: #{tpu_custom_call.1} parent=1 // pred_fallthru
      _
    // Predicated region
    $region34: #{tpu_custom_call.1} parent=1 // pred_check
      _
    $region35: #{tpu_custom_call.1} parent=1 // pred_check_branch
      %34 = sbr.rel (0) target = $region37
    $region36: #{tpu_custom_call.1} parent=1 // pred_region
      _
    $region37: #{tpu_custom_call.1} parent=1 // pred_fallthru
      _
    // Predicated region
    $region38: #{tpu_custom_call.1} parent=1 // pred_check
      _
    $region39: #{tpu_custom_call.1} parent=1 // pred_check_branch
      %36 = sbr.rel (0) target = $region41
    $region40: #{tpu_custom_call.1} parent=1 // pred_region
      _
    $region41: #{tpu_custom_call.1} parent=1 // pred_fallthru
      _
    // Predicated region
    $region42: #{tpu_custom_call.1} parent=1 // pred_check
      _
    $region43: #{tpu_custom_call.1} parent=1 // pred_check_branch
      %38 = sbr.rel (0) target = $region45
    $region44: #{tpu_custom_call.1} parent=1 // pred_region
      _
    $region45: #{tpu_custom_call.1} parent=1 // pred_fallthru
      _
    %v39 = vld [vmem:[%s0] sm:$0xff]
    %v40 = vld [vmem:[%s1] sm:$0xff]
    %v41 = vld [vmem:[%s1 + $0x8] sm:$0xff]
    %v42 = vld [vmem:[%s1 + $0x10] sm:$0xff]
    %v43 = vld [vmem:[%s1 + $0x18] sm:$0xff]
    %v44 = vld [vmem:[%s2] sm:$0x1]
    %v46 = vlaneseq
    %v47 = vshrl.u32 %v46, 7
    %v48 = vsub.s32 0, %v47
    %v49 = vrot.slane %v44, %v48
    %vm51 = vcmask 261120
    %v53 = vsel %vm51, %v39, 0
    %55 = vmatprep.subr.mxu0 0.0
    %56 = vmatpush1.msra.mxu0 %v40
    %57 = vmatprep.subr.mxu0 0.0
    %58 = vmatpush1.msra.mxu0 %v41
    %59 = vmatprep.subr.mxu0 0.0
    %60 = vmatpush1.msra.mxu0 %v42
    %61 = vmatprep.subr.mxu0 0.0
    %62 = vmatpush1.msra.mxu0 %v43
    %63 = vmatprep.subr.mxu0 0.0
    %64 = vmatpush1.msra.mxu0 0.0
    %65 = vmatprep.subr.mxu0 0.0
    %66 = vmatpush1.msra.mxu0 0.0
    %67 = vmatprep.subr.mxu0 0.0
    %68 = vmatpush1.msra.mxu0 0.0
    %69 = vmatprep.subr.mxu0 0.0
    %70 = vmatpush1.msra.mxu0 0.0
    %71 = vmatprep.subr.mxu0 0.0
    %72 = vmatpush1.msra.mxu0 0.0
    %73 = vmatprep.subr.mxu0 0.0
    %74 = vmatpush1.msra.mxu0 0.0
    %75 = vmatprep.subr.mxu0 0.0
    %76 = vmatpush1.msra.mxu0 0.0
    %77 = vmatprep.subr.mxu0 0.0
    %78 = vmatpush1.msra.mxu0 0.0
    %79 = vmatprep.subr.mxu0 0.0
    %80 = vmatpush1.msra.mxu0 0.0
    %81 = vmatprep.subr.mxu0 0.0
    %82 = vmatpush1.msra.mxu0 0.0
    %83 = vmatprep.subr.mxu0 0.0
    %84 = vmatpush1.msra.mxu0 0.0
    %85 = vmatprep.subr.mxu0 0.0
    %86 = vmatpush1.msra.mxu0 0.0
    %87 = vmatprep.subr.mxu0 0.0
    %88 = vmatpush1.msra.mxu0 0.0
    %89 = vmatprep.subr.mxu0 0.0
    %90 = vmatpush1.msra.mxu0 0.0
    %91 = vmatprep.subr.mxu0 0.0
    %92 = vmatpush1.msra.mxu0 0.0
    %93 = vmatprep.subr.mxu0 0.0
    %94 = vmatpush1.msra.mxu0 0.0
    %95 = vmatprep.subr.mxu0 0.0
    %96 = vmatpush1.msra.mxu0 0.0
    %97 = vmatprep.subr.mxu0 0.0
    %98 = vmatpush1.msra.mxu0 0.0
    %99 = vmatprep.subr.mxu0 0.0
    %100 = vmatpush1.msra.mxu0 0.0
    %101 = vmatprep.subr.mxu0 0.0
    %102 = vmatpush1.msra.mxu0 0.0
    %103 = vmatprep.subr.mxu0 0.0
    %104 = vmatpush1.msra.mxu0 0.0
    %105 = vmatprep.subr.mxu0 0.0
    %106 = vmatpush1.msra.mxu0 0.0
    %107 = vmatprep.subr.mxu0 0.0
    %108 = vmatpush1.msra.mxu0 0.0
    %109 = vmatprep.subr.mxu0 0.0
    %110 = vmatpush1.msra.mxu0 0.0
    %111 = vmatprep.subr.mxu0 0.0
    %112 = vmatpush1.msra.mxu0 0.0
    %113 = vmatprep.subr.mxu0 0.0
    %114 = vmatpush1.msra.mxu0 0.0
    %115 = vmatprep.subr.mxu0 0.0
    %116 = vmatpush1.msra.mxu0 0.0
    %117 = vmatprep.subr.mxu0 0.0
    %118 = vmatpush1.msra.mxu0 0.0
    %119 = vmatprep.mubr.f32.mxu0 0.0
    %120 = vmatmul.mubr.f32.gmra.mrb[0].mxu0 %v53
    %v121 = vpop.f32.mrb[0].mxu0
    %v122 = vadd.f32 %v49, %v121
    %v123 = vpop.f32.mrb[0].mxu0
    %124 = vdwg.mxu0
    %v125 = vmax.f32 %v122, 0.0
    %v126 = vld [vmem:[%s3] sm:$0xff]
    %v127 = vld [vmem:[%s3 + $0x8] sm:$0xff]
    %v128 = vld [vmem:[%s3 + $0x10] sm:$0xff]
    %v129 = vld [vmem:[%s3 + $0x18] sm:$0xff]
    %v130 = vld [vmem:[%s3 + $0x20] sm:$0xff]
    %v131 = vld [vmem:[%s3 + $0x28] sm:$0xff]
    %v132 = vld [vmem:[%s3 + $0x30] sm:$0xff]
    %v133 = vld [vmem:[%s3 + $0x38] sm:$0xff]
    %v134 = vld [vmem:[%s4] sm:$0x1]
    %v136 = vlaneseq
    %v137 = vshrl.u32 %v136, 7
    %v138 = vsub.s32 0, %v137
    %v139 = vrot.slane %v134, %v138
    %vm141 = vcmask 523264
    %v143 = vsel %vm141, %v125, 0
    %145 = vmatprep.subr.mxu0 0.0
    %146 = vmatpush1.msra.mxu0 %v126
    %147 = vmatprep.subr.mxu0 0.0
    %148 = vmatpush1.msra.mxu0 %v127
    %149 = vmatprep.subr.mxu0 0.0
    %150 = vmatpush1.msra.mxu0 %v128
    %151 = vmatprep.subr.mxu0 0.0
    %152 = vmatpush1.msra.mxu0 %v129
    %153 = vmatprep.subr.mxu0 0.0
    %154 = vmatpush1.msra.mxu0 %v130
    %155 = vmatprep.subr.mxu0 0.0
    %156 = vmatpush1.msra.mxu0 %v131
    %157 = vmatprep.subr.mxu0 0.0
    %158 = vmatpush1.msra.mxu0 %v132
    %159 = vmatprep.subr.mxu0 0.0
    %160 = vmatpush1.msra.mxu0 %v133
    %161 = vmatprep.subr.mxu0 0.0
    %162 = vmatpush1.msra.mxu0 0.0
    %163 = vmatprep.subr.mxu0 0.0
    %164 = vmatpush1.msra.mxu0 0.0
    %165 = vmatprep.subr.mxu0 0.0
    %166 = vmatpush1.msra.mxu0 0.0
    %167 = vmatprep.subr.mxu0 0.0
    %168 = vmatpush1.msra.mxu0 0.0
    %169 = vmatprep.subr.mxu0 0.0
    %170 = vmatpush1.msra.mxu0 0.0
    %171 = vmatprep.subr.mxu0 0.0
    %172 = vmatpush1.msra.mxu0 0.0
    %173 = vmatprep.subr.mxu0 0.0
    %174 = vmatpush1.msra.mxu0 0.0
    %175 = vmatprep.subr.mxu0 0.0
    %176 = vmatpush1.msra.mxu0 0.0
    %177 = vmatprep.subr.mxu0 0.0
    %178 = vmatpush1.msra.mxu0 0.0
    %179 = vmatprep.subr.mxu0 0.0
    %180 = vmatpush1.msra.mxu0 0.0
    %181 = vmatprep.subr.mxu0 0.0
    %182 = vmatpush1.msra.mxu0 0.0
    %183 = vmatprep.subr.mxu0 0.0
    %184 = vmatpush1.msra.mxu0 0.0
    %185 = vmatprep.subr.mxu0 0.0
    %186 = vmatpush1.msra.mxu0 0.0
    %187 = vmatprep.subr.mxu0 0.0
    %188 = vmatpush1.msra.mxu0 0.0
    %189 = vmatprep.subr.mxu0 0.0
    %190 = vmatpush1.msra.mxu0 0.0
    %191 = vmatprep.subr.mxu0 0.0
    %192 = vmatpush1.msra.mxu0 0.0
    %193 = vmatprep.subr.mxu0 0.0
    %194 = vmatpush1.msra.mxu0 0.0
    %195 = vmatprep.subr.mxu0 0.0
    %196 = vmatpush1.msra.mxu0 0.0
    %197 = vmatprep.subr.mxu0 0.0
    %198 = vmatpush1.msra.mxu0 0.0
    %199 = vmatprep.subr.mxu0 0.0
    %200 = vmatpush1.msra.mxu0 0.0
    %201 = vmatprep.subr.mxu0 0.0
    %202 = vmatpush1.msra.mxu0 0.0
    %203 = vmatprep.subr.mxu0 0.0
    %204 = vmatpush1.msra.mxu0 0.0
    %205 = vmatprep.subr.mxu0 0.0
    %206 = vmatpush1.msra.mxu0 0.0
    %207 = vmatprep.subr.mxu0 0.0
    %208 = vmatpush1.msra.mxu0 0.0
    %209 = vmatprep.mubr.f32.mxu0 0.0
    %210 = vmatmul.mubr.f32.gmra.mrb[0].mxu0 %v143
    %v211 = vpop.f32.mrb[0].mxu0
    %v212 = vadd.f32 %v139, %v211
    %v213 = vpop.f32.mrb[0].mxu0
    %214 = vdwg.mxu0
    %v215 = vmul.f32 %v212, %v212
    %vm216 = vcmask 130048
    %v217 = vsel %vm216, %v215, 0.0
    %218 = vadd.xlane.f32.xlu0 %v217
    %v219 = vpop.xlane.xlu0 %218
    %v220 = vmax.f32 %v219, 1e-24
    %v221 = vrsqrt.pop %v220
    %v222 = vmul.f32 %v212, %v221
    %v223 = vld [vmem:[%s5] sm:$0xff]
    %v224 = vld [vmem:[%s5 + $0x8] sm:$0xff]
    %v225 = vld [vmem:[%s6] sm:$0x1]
    %v227 = vlaneseq
    %v228 = vshrl.u32 %v227, 7
    %v229 = vsub.s32 0, %v228
    %v230 = vrot.slane %v225, %v229
    %v233 = vsel %vm216, %v222, 0
    %235 = vmatprep.subr.mxu0 0.0
    %236 = vmatpush1.msra.mxu0 %v223
    %237 = vmatprep.subr.mxu0 0.0
    %238 = vmatpush1.msra.mxu0 %v224
    %239 = vmatprep.subr.mxu0 0.0
    %240 = vmatpush1.msra.mxu0 0.0
    %241 = vmatprep.subr.mxu0 0.0
    %242 = vmatpush1.msra.mxu0 0.0
    %243 = vmatprep.subr.mxu0 0.0
    %244 = vmatpush1.msra.mxu0 0.0
    %245 = vmatprep.subr.mxu0 0.0
    %246 = vmatpush1.msra.mxu0 0.0
    %247 = vmatprep.subr.mxu0 0.0
    %248 = vmatpush1.msra.mxu0 0.0
    %249 = vmatprep.subr.mxu0 0.0
    %250 = vmatpush1.msra.mxu0 0.0
    %251 = vmatprep.subr.mxu0 0.0
    %252 = vmatpush1.msra.mxu0 0.0
    %253 = vmatprep.subr.mxu0 0.0
    %254 = vmatpush1.msra.mxu0 0.0
    %255 = vmatprep.subr.mxu0 0.0
    %256 = vmatpush1.msra.mxu0 0.0
    %257 = vmatprep.subr.mxu0 0.0
    %258 = vmatpush1.msra.mxu0 0.0
    %259 = vmatprep.subr.mxu0 0.0
    %260 = vmatpush1.msra.mxu0 0.0
    %261 = vmatprep.subr.mxu0 0.0
    %262 = vmatpush1.msra.mxu0 0.0
    %263 = vmatprep.subr.mxu0 0.0
    %264 = vmatpush1.msra.mxu0 0.0
    %265 = vmatprep.subr.mxu0 0.0
    %266 = vmatpush1.msra.mxu0 0.0
    %267 = vmatprep.subr.mxu0 0.0
    %268 = vmatpush1.msra.mxu0 0.0
    %269 = vmatprep.subr.mxu0 0.0
    %270 = vmatpush1.msra.mxu0 0.0
    %271 = vmatprep.subr.mxu0 0.0
    %272 = vmatpush1.msra.mxu0 0.0
    %273 = vmatprep.subr.mxu0 0.0
    %274 = vmatpush1.msra.mxu0 0.0
    %275 = vmatprep.subr.mxu0 0.0
    %276 = vmatpush1.msra.mxu0 0.0
    %277 = vmatprep.subr.mxu0 0.0
    %278 = vmatpush1.msra.mxu0 0.0
    %279 = vmatprep.subr.mxu0 0.0
    %280 = vmatpush1.msra.mxu0 0.0
    %281 = vmatprep.subr.mxu0 0.0
    %282 = vmatpush1.msra.mxu0 0.0
    %283 = vmatprep.subr.mxu0 0.0
    %284 = vmatpush1.msra.mxu0 0.0
    %285 = vmatprep.subr.mxu0 0.0
    %286 = vmatpush1.msra.mxu0 0.0
    %287 = vmatprep.subr.mxu0 0.0
    %288 = vmatpush1.msra.mxu0 0.0
    %289 = vmatprep.subr.mxu0 0.0
    %290 = vmatpush1.msra.mxu0 0.0
    %291 = vmatprep.subr.mxu0 0.0
    %292 = vmatpush1.msra.mxu0 0.0
    %293 = vmatprep.subr.mxu0 0.0
    %294 = vmatpush1.msra.mxu0 0.0
    %295 = vmatprep.subr.mxu0 0.0
    %296 = vmatpush1.msra.mxu0 0.0
    %297 = vmatprep.subr.mxu0 0.0
    %298 = vmatpush1.msra.mxu0 0.0
    %299 = vmatprep.mubr.f32.mxu0 0.0
    %300 = vmatmul.mubr.f32.gmra.mrb[0].mxu0 %v233
    %v301 = vpop.f32.mrb[0].mxu0
    %v302 = vadd.f32 %v230, %v301
    %v303 = vpop.f32.mrb[0].mxu0
    %304 = vdwg.mxu0
    %v305 = vmax.f32 %v302, 0.0
    %v306 = vld [vmem:[%s7] sm:$0xff]
    %v307 = vld [vmem:[%s7 + $0x8] sm:$0xff]
    %v308 = vld [vmem:[%s7 + $0x10] sm:$0xff]
    %v309 = vld [vmem:[%s7 + $0x18] sm:$0xff]
    %v310 = vld [vmem:[%s7 + $0x20] sm:$0xff]
    %v311 = vld [vmem:[%s7 + $0x28] sm:$0xff]
    %v312 = vld [vmem:[%s7 + $0x30] sm:$0xff]
    %v313 = vld [vmem:[%s7 + $0x38] sm:$0xff]
    %v314 = vld [vmem:[%s8] sm:$0x1]
    %v316 = vlaneseq
    %v317 = vshrl.u32 %v316, 7
    %v318 = vsub.s32 0, %v317
    %v319 = vrot.slane %v314, %v318
    %v322 = vsel %vm141, %v305, 0
    %324 = vmatprep.subr.mxu0 0.0
    %325 = vmatpush1.msra.mxu0 %v306
    %326 = vmatprep.subr.mxu0 0.0
    %327 = vmatpush1.msra.mxu0 %v307
    %328 = vmatprep.subr.mxu0 0.0
    %329 = vmatpush1.msra.mxu0 %v308
    %330 = vmatprep.subr.mxu0 0.0
    %331 = vmatpush1.msra.mxu0 %v309
    %332 = vmatprep.subr.mxu0 0.0
    %333 = vmatpush1.msra.mxu0 %v310
    %334 = vmatprep.subr.mxu0 0.0
    %335 = vmatpush1.msra.mxu0 %v311
    %336 = vmatprep.subr.mxu0 0.0
    %337 = vmatpush1.msra.mxu0 %v312
    %338 = vmatprep.subr.mxu0 0.0
    %339 = vmatpush1.msra.mxu0 %v313
    %340 = vmatprep.subr.mxu0 0.0
    %341 = vmatpush1.msra.mxu0 0.0
    %342 = vmatprep.subr.mxu0 0.0
    %343 = vmatpush1.msra.mxu0 0.0
    %344 = vmatprep.subr.mxu0 0.0
    %345 = vmatpush1.msra.mxu0 0.0
    %346 = vmatprep.subr.mxu0 0.0
    %347 = vmatpush1.msra.mxu0 0.0
    %348 = vmatprep.subr.mxu0 0.0
    %349 = vmatpush1.msra.mxu0 0.0
    %350 = vmatprep.subr.mxu0 0.0
    %351 = vmatpush1.msra.mxu0 0.0
    %352 = vmatprep.subr.mxu0 0.0
    %353 = vmatpush1.msra.mxu0 0.0
    %354 = vmatprep.subr.mxu0 0.0
    %355 = vmatpush1.msra.mxu0 0.0
    %356 = vmatprep.subr.mxu0 0.0
    %357 = vmatpush1.msra.mxu0 0.0
    %358 = vmatprep.subr.mxu0 0.0
    %359 = vmatpush1.msra.mxu0 0.0
    %360 = vmatprep.subr.mxu0 0.0
    %361 = vmatpush1.msra.mxu0 0.0
    %362 = vmatprep.subr.mxu0 0.0
    %363 = vmatpush1.msra.mxu0 0.0
    %364 = vmatprep.subr.mxu0 0.0
    %365 = vmatpush1.msra.mxu0 0.0
    %366 = vmatprep.subr.mxu0 0.0
    %367 = vmatpush1.msra.mxu0 0.0
    %368 = vmatprep.subr.mxu0 0.0
    %369 = vmatpush1.msra.mxu0 0.0
    %370 = vmatprep.subr.mxu0 0.0
    %371 = vmatpush1.msra.mxu0 0.0
    %372 = vmatprep.subr.mxu0 0.0
    %373 = vmatpush1.msra.mxu0 0.0
    %374 = vmatprep.subr.mxu0 0.0
    %375 = vmatpush1.msra.mxu0 0.0
    %376 = vmatprep.subr.mxu0 0.0
    %377 = vmatpush1.msra.mxu0 0.0
    %378 = vmatprep.subr.mxu0 0.0
    %379 = vmatpush1.msra.mxu0 0.0
    %380 = vmatprep.subr.mxu0 0.0
    %381 = vmatpush1.msra.mxu0 0.0
    %382 = vmatprep.subr.mxu0 0.0
    %383 = vmatpush1.msra.mxu0 0.0
    %384 = vmatprep.subr.mxu0 0.0
    %385 = vmatpush1.msra.mxu0 0.0
    %386 = vmatprep.subr.mxu0 0.0
    %387 = vmatpush1.msra.mxu0 0.0
    %388 = vmatprep.mubr.f32.mxu0 0.0
    %389 = vmatmul.mubr.f32.gmra.mrb[0].mxu0 %v322
    %v390 = vpop.f32.mrb[0].mxu0
    %v391 = vadd.f32 %v319, %v390
    %v392 = vpop.f32.mrb[0].mxu0
    %393 = vdwg.mxu0
    %v394 = vmax.f32 %v391, 0.0
    %v395 = vld [vmem:[%s9] sm:$0xff]
    %v396 = vld [vmem:[%s9 + $0x8] sm:$0xff]
    %v397 = vld [vmem:[%s9 + $0x10] sm:$0xff]
    %v398 = vld [vmem:[%s9 + $0x18] sm:$0xff]
    %v399 = vld [vmem:[%s9 + $0x20] sm:$0xff]
    %v400 = vld [vmem:[%s9 + $0x28] sm:$0xff]
    %v401 = vld [vmem:[%s9 + $0x30] sm:$0xff]
    %v402 = vld [vmem:[%s9 + $0x38] sm:$0xff]
    %v403 = vld [vmem:[%s10] sm:$0x1]
    %v405 = vlaneseq
    %v406 = vshrl.u32 %v405, 7
    %v407 = vsub.s32 0, %v406
    %v408 = vrot.slane %v403, %v407
    %v411 = vsel %vm141, %v394, 0
    %413 = vmatprep.subr.mxu0 0.0
    %414 = vmatpush1.msra.mxu0 %v395
    %415 = vmatprep.subr.mxu0 0.0
    %416 = vmatpush1.msra.mxu0 %v396
    %417 = vmatprep.subr.mxu0 0.0
    %418 = vmatpush1.msra.mxu0 %v397
    %419 = vmatprep.subr.mxu0 0.0
    %420 = vmatpush1.msra.mxu0 %v398
    %421 = vmatprep.subr.mxu0 0.0
    %422 = vmatpush1.msra.mxu0 %v399
    %423 = vmatprep.subr.mxu0 0.0
    %424 = vmatpush1.msra.mxu0 %v400
    %425 = vmatprep.subr.mxu0 0.0
    %426 = vmatpush1.msra.mxu0 %v401
    %427 = vmatprep.subr.mxu0 0.0
    %428 = vmatpush1.msra.mxu0 %v402
    %429 = vmatprep.subr.mxu0 0.0
    %430 = vmatpush1.msra.mxu0 0.0
    %431 = vmatprep.subr.mxu0 0.0
    %432 = vmatpush1.msra.mxu0 0.0
    %433 = vmatprep.subr.mxu0 0.0
    %434 = vmatpush1.msra.mxu0 0.0
    %435 = vmatprep.subr.mxu0 0.0
    %436 = vmatpush1.msra.mxu0 0.0
    %437 = vmatprep.subr.mxu0 0.0
    %438 = vmatpush1.msra.mxu0 0.0
    %439 = vmatprep.subr.mxu0 0.0
    %440 = vmatpush1.msra.mxu0 0.0
    %441 = vmatprep.subr.mxu0 0.0
    %442 = vmatpush1.msra.mxu0 0.0
    %443 = vmatprep.subr.mxu0 0.0
    %444 = vmatpush1.msra.mxu0 0.0
    %445 = vmatprep.subr.mxu0 0.0
    %446 = vmatpush1.msra.mxu0 0.0
    %447 = vmatprep.subr.mxu0 0.0
    %448 = vmatpush1.msra.mxu0 0.0
    %449 = vmatprep.subr.mxu0 0.0
    %450 = vmatpush1.msra.mxu0 0.0
    %451 = vmatprep.subr.mxu0 0.0
    %452 = vmatpush1.msra.mxu0 0.0
    %453 = vmatprep.subr.mxu0 0.0
    %454 = vmatpush1.msra.mxu0 0.0
    %455 = vmatprep.subr.mxu0 0.0
    %456 = vmatpush1.msra.mxu0 0.0
    %457 = vmatprep.subr.mxu0 0.0
    %458 = vmatpush1.msra.mxu0 0.0
    %459 = vmatprep.subr.mxu0 0.0
    %460 = vmatpush1.msra.mxu0 0.0
    %461 = vmatprep.subr.mxu0 0.0
    %462 = vmatpush1.msra.mxu0 0.0
    %463 = vmatprep.subr.mxu0 0.0
    %464 = vmatpush1.msra.mxu0 0.0
    %465 = vmatprep.subr.mxu0 0.0
    %466 = vmatpush1.msra.mxu0 0.0
    %467 = vmatprep.subr.mxu0 0.0
    %468 = vmatpush1.msra.mxu0 0.0
    %469 = vmatprep.subr.mxu0 0.0
    %470 = vmatpush1.msra.mxu0 0.0
    %471 = vmatprep.subr.mxu0 0.0
    %472 = vmatpush1.msra.mxu0 0.0
    %473 = vmatprep.subr.mxu0 0.0
    %474 = vmatpush1.msra.mxu0 0.0
    %475 = vmatprep.subr.mxu0 0.0
    %476 = vmatpush1.msra.mxu0 0.0
    %477 = vmatprep.mubr.f32.mxu0 0.0
    %478 = vmatmul.mubr.f32.gmra.mrb[0].mxu0 %v411
    %v479 = vpop.f32.mrb[0].mxu0
    %v480 = vadd.f32 %v408, %v479
    %v481 = vpop.f32.mrb[0].mxu0
    %482 = vdwg.mxu0
    %483 = vst.msk [vmem:[#allocation2] sm:$0xff] %vm51, %v480
    // Predicated region
    $region46: #{tpu_custom_call.1} parent=1 // pred_check
      _
    $region47: #{tpu_custom_call.1} parent=1 // pred_check_branch
      %485 = sbr.rel (0) target = $region49
    $region48: #{tpu_custom_call.1} parent=1 // pred_region
      %s487 = ssub.s32 128, 128
      %488 = vsyncadd [#allocation3], %s487
      %s490 = sshll.u32 [#allocation2], 4
      %s491 = int_to_ptr.vmem [resolvable:$true] %s490
      %493 = dma.vmem_to_hbm [thread:$0]  %s491, 128, %s11, [#allocation3]
    $region49: #{tpu_custom_call.1} parent=1 // pred_fallthru
      _
    // Predicated region
    $region50: #{tpu_custom_call.1} parent=1 // pred_check
      _
    $region51: #{tpu_custom_call.1} parent=1 // pred_check_branch
      %495 = sbr.rel (0) target = $region53
    $region52: #{tpu_custom_call.1} parent=1 // pred_region
      %496 = dma.done [#allocation3], 128
    $region53: #{tpu_custom_call.1} parent=1 // pred_fallthru
      _
    %497 = vsyncpa [#allocation3], 1

</llo_original>
